<compile_context>
chip_gen: v5e
topology: v5e:2x2
jax: 0.10.0
libtpu: 0.0.40
codegen_flags: <defaults>
</compile_context>

<pallas_src>
import jax
import jax.numpy as jnp
from jax.experimental import pallas as pl
from jax.experimental.pallas import tpu as pltpu


def _make_convbr_kernel(*, NB, H, W, H_out, W_out, C_in, C_out, KH, KW,
                        stride, padding, dilation, fuse_taps, compute_dtype):
    HW = H_out * W_out
    P = NB * HW
    KK = KH * KW
    has_pad = padding > 0
    # contract the LAST dim of both operands: (C_out, K) x (P, K) -> (C_out, P)
    cdims = (((1,), (1,)), ((), ()))

    def kernel(x_ref, w_ref, b_ref, o_ref, *scratch):
        # x_ref: (NB, H, W, C_in)      unpadded NHWC activations (compute dtype)
        # w_ref: (C_out, KH*KW*C_in)   BN-scale-folded weight (compute dtype)
        # b_ref: (C_out, 1)            folded BN bias (f32)
        # o_ref: (NB, C_out, H_out*W_out)  lane-dense output block
        if has_pad:
            xp_ref, = scratch          # (NB, H+2p, W+2p, C_in) halo buffer
            p = padding
            Wp = W + 2 * p
            # Zero ONLY the four border stripes, every step (scratch is
            # per-core under "parallel" semantics -- do NOT gate on program_id)
            xp_ref[:, :p, :, :] = jnp.zeros((NB, p, Wp, C_in), compute_dtype)
            xp_ref[:, p + H:, :, :] = jnp.zeros((NB, p, Wp, C_in), compute_dtype)
            xp_ref[:, p:p + H, :p, :] = jnp.zeros((NB, H, p, C_in), compute_dtype)
            xp_ref[:, p:p + H, p + W:, :] = jnp.zeros((NB, H, p, C_in),
                                                      compute_dtype)
            # Single interior copy (v2 zeroed the whole image and then
            # overwrote the interior: two full-image VMEM write passes).
            xp_ref[:, p:p + H, p:p + W, :] = x_ref[...]
            src = xp_ref
        else:
            src = x_ref

        def tap(i, j):
            h0, w0 = i * dilation, j * dilation
            if stride == 1:
                return src[:, h0:h0 + H_out, w0:w0 + W_out, :]
            # strided reads straight from the ref (no value-level lax.slice)
            return src[:, pl.ds(h0, H_out, stride=stride),
                       pl.ds(w0, W_out, stride=stride), :]

        if fuse_taps:
            # K = KH*KW*C_in is MXU-dense: one big matmul over the im2col slab.
            slab = jnp.concatenate(
                [tap(i, j) for i in range(KH) for j in range(KW)], axis=-1)
            slab = slab.reshape(P, KK * C_in)
            acc = jax.lax.dot_general(w_ref[...], slab, cdims,
                                      preferred_element_type=jnp.float32)
        else:
            # Per-tap accumulation: no concat, no slab.  Each tap slice
            # reshapes for free (minor dim C_in unchanged) and feeds the MXU as
            # w_tap (C_out, C_in) x tap (P, C_in)^T -> (C_out, P).
            acc = None
            t_idx = 0
            for i in range(KH):
                for j in range(KW):
                    tv = tap(i, j).reshape(P, C_in)
                    w_t = w_ref[:, t_idx * C_in:(t_idx + 1) * C_in]
                    contrib = jax.lax.dot_general(
                        w_t, tv, cdims, preferred_element_type=jnp.float32)
                    acc = contrib if acc is None else acc + contrib
                    t_idx += 1

        # Fused BN bias + ReLU, f32, fully lane-dense (C_out, P).
        y = jnp.maximum(acc + b_ref[...], 0.0)

        # Lane-slice stores (no transposes): o_ref[n] <- (C_out, HW).
        for n in range(NB):
            o_ref[n] = y[:, n * HW:(n + 1) * HW].astype(o_ref.dtype)

    return kernel


def conv_br_pallas(x_nchw, weight_oihw, gamma, beta, running_mean, running_var,
                   *, stride=1, padding=0, dilation=1, eps=1e-5,
                   compute_dtype=None, batch_block=None, fuse_taps=None):
    """ConvBR forward: Conv2d(bias=False) + BatchNorm2d(eval) + ReLU."""
    N, C_in, H, W = x_nchw.shape
    C_out, C_in_w, KH, KW = weight_oihw.shape
    assert C_in == C_in_w

    H_out = (H + 2 * padding - dilation * (KH - 1) - 1) // stride + 1
    W_out = (W + 2 * padding - dilation * (KW - 1) - 1) // stride + 1
    HW = H_out * W_out
    H_pad, W_pad = H + 2 * padding, W + 2 * padding
    KKC = KH * KW * C_in

    out_dtype = x_nchw.dtype
    if compute_dtype is None:
        # Default matches the module's dtype; pass jnp.bfloat16 for inference
        # (halves input DMA + halo VMEM, f32 MXU accumulation is kept).
        compute_dtype = x_nchw.dtype
    compute_dtype = jnp.dtype(compute_dtype)

    if fuse_taps is None:
        # Fused im2col slab only pays off when the contraction dim is MXU-dense.
        fuse_taps = KKC >= 128

    # ---- generation-aware VMEM budget --------------------------------------
    try:
        vmem_cap = int(pltpu.get_tpu_info().vmem_capacity_bytes)
    except Exception:
        vmem_cap = 64 * 1024 * 1024
    cap = (vmem_cap * 3) // 4   # ~96 MiB on v5e/v6e, ~48 MiB on v7x

    ru = lambda v, m: -(-v // m) * m
    isz = compute_dtype.itemsize
    osz = jnp.dtype(out_dtype).itemsize

    def vmem_estimate(nb):
        in_blk = nb * H * ru(W, 8) * ru(C_in, 128) * isz
        halo = (nb * H_pad * ru(W_pad, 8) * ru(C_in, 128) * isz
                if padding > 0 else 0)
        out_blk = nb * ru(C_out, 8) * ru(HW, 128) * osz
        w_blk = ru(C_out, 8) * ru(KKC, 128) * isz
        b_blk = ru(C_out, 8) * 128 * 4
        acc_blk = ru(C_out, 8) * ru(nb * HW, 128) * 4
        if fuse_taps:
            work = 2 * nb * H_out * ru(W_out, 8) * ru(KKC, 128) * isz
        else:
            work = 3 * nb * H_out * ru(W_out, 8) * ru(C_in, 128) * isz
        # in/out/weight/bias blocks are double-buffered by the pipeline.
        return 2 * (in_blk + out_blk + w_blk + b_blk) + halo + acc_blk + work \
            + (2 << 20)

    # ---- batch block: keep grid = N // nb >= 2 so both v7x TCs get work ----
    if batch_block is None:
        nb = 1 if N < 4 else min(8, N // 2)
    else:
        nb = max(1, min(batch_block, N))
    while N % nb:
        nb -= 1
    while nb > 1 and vmem_estimate(nb) > cap:
        nb -= 1
        while N % nb:
            nb -= 1
    if vmem_estimate(nb) > cap:
        raise NotImplementedError(
            "ConvBR tile exceeds the VMEM budget even at batch_block=1. "
            "TODO(synk): spatial H_out-row tiling with an overlapping halo is "
            "required for this layer size (most relevant on v7x/64MiB); "
            "consider compute_dtype=jnp.bfloat16 as a stopgap.")

    # ---- wrapper glue (not the hot path): layout + BN folding --------------
    x_nhwc = jnp.transpose(x_nchw, (0, 2, 3, 1)).astype(compute_dtype)

    f32 = jnp.float32
    scale = gamma.astype(f32) / jnp.sqrt(running_var.astype(f32) + eps)  # (C_out,)
    bias = (beta.astype(f32)
            - running_mean.astype(f32) * scale).reshape(C_out, 1)        # (C_out,1)
    # (C_out, KH, KW, C_in) * scale -> (C_out, KKC); tap order (i, j, c)
    w_folded = (jnp.transpose(weight_oihw.astype(f32), (0, 2, 3, 1))
                * scale[:, None, None, None]).reshape(C_out, KKC)
    w_folded = w_folded.astype(compute_dtype)

    kernel = _make_convbr_kernel(
        NB=nb, H=H, W=W, H_out=H_out, W_out=W_out, C_in=C_in, C_out=C_out,
        KH=KH, KW=KW, stride=stride, padding=padding, dilation=dilation,
        fuse_taps=fuse_taps, compute_dtype=compute_dtype)

    scratch_shapes = []
    if padding > 0:
        scratch_shapes.append(
            pltpu.VMEM((nb, H_pad, W_pad, C_in), compute_dtype))

    vmem_limit = int(min(cap, max(vmem_estimate(nb), 32 * 1024 * 1024)))

    out = pl.pallas_call(
        kernel,
        out_shape=jax.ShapeDtypeStruct((N, C_out, HW), out_dtype),
        grid_spec=pltpu.PrefetchScalarGridSpec(
            num_scalar_prefetch=0,
            grid=(N // nb,),
            in_specs=[
                pl.BlockSpec((nb, H, W, C_in), lambda b: (b, 0, 0, 0)),
                pl.BlockSpec((C_out, KKC), lambda b: (0, 0)),
                pl.BlockSpec((C_out, 1), lambda b: (0, 0)),
            ],
            out_specs=pl.BlockSpec((nb, C_out, HW), lambda b: (b, 0, 0)),
            scratch_shapes=scratch_shapes,
        ),
        compiler_params=pltpu.CompilerParams(
            dimension_semantics=("parallel",),
            vmem_limit_bytes=vmem_limit,
        ),
    )(x_nhwc, w_folded, bias)

    # Kernel already produced (N, C_out, H_out*W_out): free metadata reshape.
    return out.reshape(N, C_out, H_out, W_out)


def conv_br_reference(x_nchw, weight_oihw, gamma, beta, running_mean,
                      running_var, *, stride=1, padding=0, dilation=1,
                      eps=1e-5):
    """Pure-JAX reference (same semantics) for verification."""
    y = jax.lax.conv_general_dilated(
        x_nchw, weight_oihw,
        window_strides=(stride, stride),
        padding=((padding, padding), (padding, padding)),
        rhs_dilation=(dilation, dilation),
        dimension_numbers=("NCHW", "OIHW", "NCHW"),
    )
    scale = (gamma / jnp.sqrt(running_var + eps)).reshape(1, -1, 1, 1)
    bias = (beta - running_mean * gamma / jnp.sqrt(running_var + eps)
            ).reshape(1, -1, 1, 1)
    return jnp.maximum(y * scale + bias, 0.0)


if __name__ == "__main__":
    # ConvBR(in_channel=4, out_channel=8, kernel_size=3, stride=1, padding=1)
    N, C_in, H, W = 2, 4, 16, 16
    C_out, K = 8, 3

    key = jax.random.PRNGKey(0)
    k_x, k_w, k_g, k_b, k_m, k_v = jax.random.split(key, 6)

    x = jax.random.normal(k_x, (N, C_in, H, W), dtype=jnp.float32)
    weight = jax.random.normal(k_w, (C_out, C_in, K, K),
                               dtype=jnp.float32) * 0.1
    gamma = 1.0 + 0.1 * jax.random.normal(k_g, (C_out,), dtype=jnp.float32)
    beta = 0.1 * jax.random.normal(k_b, (C_out,), dtype=jnp.float32)
    running_mean = 0.1 * jax.random.normal(k_m, (C_out,), dtype=jnp.float32)
    running_var = jnp.abs(jax.random.normal(k_v, (C_out,),
                                            dtype=jnp.float32)) + 0.5

    # --- 'same' conv (stride=1, padding=1): f32 compute, tight tolerance ----
    ref = conv_br_reference(x, weight, gamma, beta, running_mean, running_var,
                            stride=1, padding=1, dilation=1)
    out = conv_br_pallas(x, weight, gamma, beta, running_mean, running_var,
                         stride=1, padding=1, dilation=1)
    out = jax.block_until_ready(out)
    assert out.shape == (N, C_out, H, W), out.shape
    assert jnp.allclose(out, ref, atol=1e-4, rtol=1e-4), \
        "f32 padded mismatch vs reference"

    # --- valid conv (padding=0): exercises the no-halo path -----------------
    ref0 = conv_br_reference(x, weight, gamma, beta, running_mean, running_var,
                             stride=1, padding=0, dilation=1)
    out0 = conv_br_pallas(x, weight, gamma, beta, running_mean, running_var,
                          stride=1, padding=0, dilation=1)
    out0 = jax.block_until_ready(out0)
    assert out0.shape == (N, C_out, H - K + 1, W - K + 1), out0.shape
    assert jnp.allclose(out0, ref0, atol=1e-4, rtol=1e-4), \
        "f32 valid mismatch vs reference"

    # --- bf16 compute path (f32 accumulation), looser tolerance -------------
    # Note: BN scale is folded into bf16 weights, so rounding differs slightly
    # from a PyTorch bf16 conv-then-BN pipeline.
    out_bf16 = conv_br_pallas(x, weight, gamma, beta, running_mean, running_var,
                              stride=1, padding=1, dilation=1,
                              compute_dtype=jnp.bfloat16)
    out_bf16 = jax.block_until_ready(out_bf16)
    assert jnp.allclose(out_bf16, ref, atol=2e-1, rtol=5e-2), \
        "bf16 mismatch vs reference"

    print("KERNEL_OK")
</pallas_src>

<mosaic_0001>
module attributes {stable_mosaic.version = 11 : i64} {
  func.func @kernel(%arg0: i32, %arg1: memref<1x16x16x4xf32, #tpu.memory_space<vmem>>, %arg2: memref<8x36xf32, #tpu.memory_space<vmem>>, %arg3: memref<8x1xf32, #tpu.memory_space<vmem>>, %arg4: memref<1x8x256xf32, #tpu.memory_space<vmem>>, %arg5: memref<1x18x18x4xf32, #tpu.memory_space<vmem>>) attributes {dimension_semantics = [#tpu.dimension_semantics<parallel>], iteration_bounds = array<i64: 2>, scalar_prefetch = 0 : i64, scratch_operands = 1 : i64, tpu.core_type = #tpu.core_type<tc>, window_params = [{transform_indices = @transform_0, window_bounds = array<i64: 1, 16, 16, 4>}, {pipeline_mode = #tpu.pipeline_mode<synchronous>, transform_indices = @transform_1, window_bounds = array<i64: 8, 36>}, {pipeline_mode = #tpu.pipeline_mode<synchronous>, transform_indices = @transform_2, window_bounds = array<i64: 8, 1>}, {transform_indices = @transform_3, window_bounds = array<i64: 1, 8, 256>}]} {
    %cst = arith.constant 0.000000e+00 : f32
    %0 = vector.broadcast %cst : f32 to vector<1x1x18x4xf32>
    %c0 = arith.constant 0 : index
    %c0_0 = arith.constant 0 : index
    %c0_1 = arith.constant 0 : index
    %c0_2 = arith.constant 0 : index
    %1 = vector.load %arg5[%c0, %c0_0, %c0_1, %c0_2] : memref<1x18x18x4xf32, #tpu.memory_space<vmem>>, vector<1x1x18x4xf32>
    tpu.vector_store %arg5[%c0, %c0_0, %c0_1, %c0_2], %0 {strides = array<i32>} : memref<1x18x18x4xf32, #tpu.memory_space<vmem>>, vector<1x1x18x4xf32>,
    %cst_3 = arith.constant 0.000000e+00 : f32
    %2 = vector.broadcast %cst_3 : f32 to vector<1x1x18x4xf32>
    %c0_4 = arith.constant 0 : index
    %c17 = arith.constant 17 : index
    %c0_5 = arith.constant 0 : index
    %c0_6 = arith.constant 0 : index
    %3 = vector.load %arg5[%c0_4, %c17, %c0_5, %c0_6] : memref<1x18x18x4xf32, #tpu.memory_space<vmem>>, vector<1x1x18x4xf32>
    tpu.vector_store %arg5[%c0_4, %c17, %c0_5, %c0_6], %2 {strides = array<i32>} : memref<1x18x18x4xf32, #tpu.memory_space<vmem>>, vector<1x1x18x4xf32>,
    %cst_7 = arith.constant 0.000000e+00 : f32
    %4 = vector.broadcast %cst_7 : f32 to vector<1x16x1x4xf32>
    %c0_8 = arith.constant 0 : index
    %c1 = arith.constant 1 : index
    %c0_9 = arith.constant 0 : index
    %c0_10 = arith.constant 0 : index
    %5 = vector.load %arg5[%c0_8, %c1, %c0_9, %c0_10] : memref<1x18x18x4xf32, #tpu.memory_space<vmem>>, vector<1x16x1x4xf32>
    tpu.vector_store %arg5[%c0_8, %c1, %c0_9, %c0_10], %4 {strides = array<i32>} : memref<1x18x18x4xf32, #tpu.memory_space<vmem>>, vector<1x16x1x4xf32>,
    %cst_11 = arith.constant 0.000000e+00 : f32
    %6 = vector.broadcast %cst_11 : f32 to vector<1x16x1x4xf32>
    %c0_12 = arith.constant 0 : index
    %c1_13 = arith.constant 1 : index
    %c17_14 = arith.constant 17 : index
    %c0_15 = arith.constant 0 : index
    %7 = vector.load %arg5[%c0_12, %c1_13, %c17_14, %c0_15] : memref<1x18x18x4xf32, #tpu.memory_space<vmem>>, vector<1x16x1x4xf32>
    tpu.vector_store %arg5[%c0_12, %c1_13, %c17_14, %c0_15], %6 {strides = array<i32>} : memref<1x18x18x4xf32, #tpu.memory_space<vmem>>, vector<1x16x1x4xf32>,
    %c0_16 = arith.constant 0 : index
    %c0_17 = arith.constant 0 : index
    %c0_18 = arith.constant 0 : index
    %c0_19 = arith.constant 0 : index
    %8 = vector.load %arg1[%c0_16, %c0_17, %c0_18, %c0_19] : memref<1x16x16x4xf32, #tpu.memory_space<vmem>>, vector<1x16x16x4xf32>
    %c0_20 = arith.constant 0 : index
    %c1_21 = arith.constant 1 : index
    %c1_22 = arith.constant 1 : index
    %c0_23 = arith.constant 0 : index
    %9 = vector.load %arg5[%c0_20, %c1_21, %c1_22, %c0_23] : memref<1x18x18x4xf32, #tpu.memory_space<vmem>>, vector<1x16x16x4xf32>
    tpu.vector_store %arg5[%c0_20, %c1_21, %c1_22, %c0_23], %8 {strides = array<i32>} : memref<1x18x18x4xf32, #tpu.memory_space<vmem>>, vector<1x16x16x4xf32>,
    %c0_24 = arith.constant 0 : index
    %c0_25 = arith.constant 0 : index
    %c0_26 = arith.constant 0 : index
    %c0_27 = arith.constant 0 : index
    %10 = vector.load %arg5[%c0_24, %c0_25, %c0_26, %c0_27] : memref<1x18x18x4xf32, #tpu.memory_space<vmem>>, vector<1x16x16x4xf32>
    %11 = vector.shape_cast %10 : vector<1x16x16x4xf32> to vector<256x4xf32>
    %c0_28 = arith.constant 0 : index
    %c0_29 = arith.constant 0 : index
    %12 = vector.load %arg2[%c0_28, %c0_29] : memref<8x36xf32, #tpu.memory_space<vmem>>, vector<8x4xf32>
    %cst_30 = arith.constant dense<0.000000e+00> : vector<8x256xf32>
    %13 = tpu.matmul %12, %11, %cst_30 {dimension_numbers = #tpu.dot_dimension_numbers<[1], [1], [0], [0], [0, 0, 1, 0], [], []>} : vector<8x4xf32>, vector<256x4xf32>, vector<8x256xf32> -> vector<8x256xf32>
    %c0_31 = arith.constant 0 : index
    %c0_32 = arith.constant 0 : index
    %c1_33 = arith.constant 1 : index
    %c0_34 = arith.constant 0 : index
    %14 = vector.load %arg5[%c0_31, %c0_32, %c1_33, %c0_34] : memref<1x18x18x4xf32, #tpu.memory_space<vmem>>, vector<1x16x16x4xf32>
    %15 = vector.shape_cast %14 : vector<1x16x16x4xf32> to vector<256x4xf32>
    %c0_35 = arith.constant 0 : index
    %c4 = arith.constant 4 : index
    %16 = vector.load %arg2[%c0_35, %c4] : memref<8x36xf32, #tpu.memory_space<vmem>>, vector<8x4xf32>
    %cst_36 = arith.constant dense<0.000000e+00> : vector<8x256xf32>
    %17 = tpu.matmul %16, %15, %cst_36 {dimension_numbers = #tpu.dot_dimension_numbers<[1], [1], [0], [0], [0, 0, 1, 0], [], []>} : vector<8x4xf32>, vector<256x4xf32>, vector<8x256xf32> -> vector<8x256xf32>
    %18 = arith.addf %13, %17 : vector<8x256xf32>
    %c0_37 = arith.constant 0 : index
    %c0_38 = arith.constant 0 : index
    %c2 = arith.constant 2 : index
    %c0_39 = arith.constant 0 : index
    %19 = vector.load %arg5[%c0_37, %c0_38, %c2, %c0_39] : memref<1x18x18x4xf32, #tpu.memory_space<vmem>>, vector<1x16x16x4xf32>
    %20 = vector.shape_cast %19 : vector<1x16x16x4xf32> to vector<256x4xf32>
    %c0_40 = arith.constant 0 : index
    %c8 = arith.constant 8 : index
    %21 = vector.load %arg2[%c0_40, %c8] : memref<8x36xf32, #tpu.memory_space<vmem>>, vector<8x4xf32>
    %cst_41 = arith.constant dense<0.000000e+00> : vector<8x256xf32>
    %22 = tpu.matmul %21, %20, %cst_41 {dimension_numbers = #tpu.dot_dimension_numbers<[1], [1], [0], [0], [0, 0, 1, 0], [], []>} : vector<8x4xf32>, vector<256x4xf32>, vector<8x256xf32> -> vector<8x256xf32>
    %23 = arith.addf %18, %22 : vector<8x256xf32>
    %c0_42 = arith.constant 0 : index
    %c1_43 = arith.constant 1 : index
    %c0_44 = arith.constant 0 : index
    %c0_45 = arith.constant 0 : index
    %24 = vector.load %arg5[%c0_42, %c1_43, %c0_44, %c0_45] : memref<1x18x18x4xf32, #tpu.memory_space<vmem>>, vector<1x16x16x4xf32>
    %25 = vector.shape_cast %24 : vector<1x16x16x4xf32> to vector<256x4xf32>
    %c0_46 = arith.constant 0 : index
    %c12 = arith.constant 12 : index
    %26 = vector.load %arg2[%c0_46, %c12] : memref<8x36xf32, #tpu.memory_space<vmem>>, vector<8x4xf32>
    %cst_47 = arith.constant dense<0.000000e+00> : vector<8x256xf32>
    %27 = tpu.matmul %26, %25, %cst_47 {dimension_numbers = #tpu.dot_dimension_numbers<[1], [1], [0], [0], [0, 0, 1, 0], [], []>} : vector<8x4xf32>, vector<256x4xf32>, vector<8x256xf32> -> vector<8x256xf32>
    %28 = arith.addf %23, %27 : vector<8x256xf32>
    %c0_48 = arith.constant 0 : index
    %c1_49 = arith.constant 1 : index
    %c1_50 = arith.constant 1 : index
    %c0_51 = arith.constant 0 : index
    %29 = vector.load %arg5[%c0_48, %c1_49, %c1_50, %c0_51] : memref<1x18x18x4xf32, #tpu.memory_space<vmem>>, vector<1x16x16x4xf32>
    %30 = vector.shape_cast %29 : vector<1x16x16x4xf32> to vector<256x4xf32>
    %c0_52 = arith.constant 0 : index
    %c16 = arith.constant 16 : index
    %31 = vector.load %arg2[%c0_52, %c16] : memref<8x36xf32, #tpu.memory_space<vmem>>, vector<8x4xf32>
    %cst_53 = arith.constant dense<0.000000e+00> : vector<8x256xf32>
    %32 = tpu.matmul %31, %30, %cst_53 {dimension_numbers = #tpu.dot_dimension_numbers<[1], [1], [0], [0], [0, 0, 1, 0], [], []>} : vector<8x4xf32>, vector<256x4xf32>, vector<8x256xf32> -> vector<8x256xf32>
    %33 = arith.addf %28, %32 : vector<8x256xf32>
    %c0_54 = arith.constant 0 : index
    %c1_55 = arith.constant 1 : index
    %c2_56 = arith.constant 2 : index
    %c0_57 = arith.constant 0 : index
    %34 = vector.load %arg5[%c0_54, %c1_55, %c2_56, %c0_57] : memref<1x18x18x4xf32, #tpu.memory_space<vmem>>, vector<1x16x16x4xf32>
    %35 = vector.shape_cast %34 : vector<1x16x16x4xf32> to vector<256x4xf32>
    %c0_58 = arith.constant 0 : index
    %c20 = arith.constant 20 : index
    %36 = vector.load %arg2[%c0_58, %c20] : memref<8x36xf32, #tpu.memory_space<vmem>>, vector<8x4xf32>
    %cst_59 = arith.constant dense<0.000000e+00> : vector<8x256xf32>
    %37 = tpu.matmul %36, %35, %cst_59 {dimension_numbers = #tpu.dot_dimension_numbers<[1], [1], [0], [0], [0, 0, 1, 0], [], []>} : vector<8x4xf32>, vector<256x4xf32>, vector<8x256xf32> -> vector<8x256xf32>
    %38 = arith.addf %33, %37 : vector<8x256xf32>
    %c0_60 = arith.constant 0 : index
    %c2_61 = arith.constant 2 : index
    %c0_62 = arith.constant 0 : index
    %c0_63 = arith.constant 0 : index
    %39 = vector.load %arg5[%c0_60, %c2_61, %c0_62, %c0_63] : memref<1x18x18x4xf32, #tpu.memory_space<vmem>>, vector<1x16x16x4xf32>
    %40 = vector.shape_cast %39 : vector<1x16x16x4xf32> to vector<256x4xf32>
    %c0_64 = arith.constant 0 : index
    %c24 = arith.constant 24 : index
    %41 = vector.load %arg2[%c0_64, %c24] : memref<8x36xf32, #tpu.memory_space<vmem>>, vector<8x4xf32>
    %cst_65 = arith.constant dense<0.000000e+00> : vector<8x256xf32>
    %42 = tpu.matmul %41, %40, %cst_65 {dimension_numbers = #tpu.dot_dimension_numbers<[1], [1], [0], [0], [0, 0, 1, 0], [], []>} : vector<8x4xf32>, vector<256x4xf32>, vector<8x256xf32> -> vector<8x256xf32>
    %43 = arith.addf %38, %42 : vector<8x256xf32>
    %c0_66 = arith.constant 0 : index
    %c2_67 = arith.constant 2 : index
    %c1_68 = arith.constant 1 : index
    %c0_69 = arith.constant 0 : index
    %44 = vector.load %arg5[%c0_66, %c2_67, %c1_68, %c0_69] : memref<1x18x18x4xf32, #tpu.memory_space<vmem>>, vector<1x16x16x4xf32>
    %45 = vector.shape_cast %44 : vector<1x16x16x4xf32> to vector<256x4xf32>
    %c0_70 = arith.constant 0 : index
    %c28 = arith.constant 28 : index
    %46 = vector.load %arg2[%c0_70, %c28] : memref<8x36xf32, #tpu.memory_space<vmem>>, vector<8x4xf32>
    %cst_71 = arith.constant dense<0.000000e+00> : vector<8x256xf32>
    %47 = tpu.matmul %46, %45, %cst_71 {dimension_numbers = #tpu.dot_dimension_numbers<[1], [1], [0], [0], [0, 0, 1, 0], [], []>} : vector<8x4xf32>, vector<256x4xf32>, vector<8x256xf32> -> vector<8x256xf32>
    %48 = arith.addf %43, %47 : vector<8x256xf32>
    %c0_72 = arith.constant 0 : index
    %c2_73 = arith.constant 2 : index
    %c2_74 = arith.constant 2 : index
    %c0_75 = arith.constant 0 : index
    %49 = vector.load %arg5[%c0_72, %c2_73, %c2_74, %c0_75] : memref<1x18x18x4xf32, #tpu.memory_space<vmem>>, vector<1x16x16x4xf32>
    %50 = vector.shape_cast %49 : vector<1x16x16x4xf32> to vector<256x4xf32>
    %c0_76 = arith.constant 0 : index
    %c32 = arith.constant 32 : index
    %51 = vector.load %arg2[%c0_76, %c32] : memref<8x36xf32, #tpu.memory_space<vmem>>, vector<8x4xf32>
    %cst_77 = arith.constant dense<0.000000e+00> : vector<8x256xf32>
    %52 = tpu.matmul %51, %50, %cst_77 {dimension_numbers = #tpu.dot_dimension_numbers<[1], [1], [0], [0], [0, 0, 1, 0], [], []>} : vector<8x4xf32>, vector<256x4xf32>, vector<8x256xf32> -> vector<8x256xf32>
    %53 = arith.addf %48, %52 : vector<8x256xf32>
    %c0_78 = arith.constant 0 : index
    %c0_79 = arith.constant 0 : index
    %54 = vector.load %arg3[%c0_78, %c0_79] : memref<8x1xf32, #tpu.memory_space<vmem>>, vector<8x1xf32>
    %55 = vector.broadcast %54 : vector<8x1xf32> to vector<8x256xf32>
    %56 = arith.addf %53, %55 : vector<8x256xf32>
    %cst_80 = arith.constant 0.000000e+00 : f32
    %57 = vector.broadcast %cst_80 : f32 to vector<8x256xf32>
    %58 = arith.maximumf %56, %57 : vector<8x256xf32>
    %c0_81 = arith.constant 0 : index
    %c0_82 = arith.constant 0 : index
    %c0_83 = arith.constant 0 : index
    %59 = vector.load %arg4[%c0_81, %c0_82, %c0_83] : memref<1x8x256xf32, #tpu.memory_space<vmem>>, vector<1x8x256xf32>
    %60 = vector.shape_cast %59 : vector<1x8x256xf32> to vector<8x256xf32>
    %61 = vector.shape_cast %58 : vector<8x256xf32> to vector<1x8x256xf32>
    tpu.vector_store %arg4[%c0_81, %c0_82, %c0_83], %61 {strides = array<i32>} : memref<1x8x256xf32, #tpu.memory_space<vmem>>, vector<1x8x256xf32>,
    return
  }
  func.func @transform_0(%arg0: i32) -> (i32, i32, i32, i32) {
    %c0_i32 = arith.constant 0 : i32
    %c0_i32_0 = arith.constant 0 : i32
    %c0_i32_1 = arith.constant 0 : i32
    %c0_i32_2 = arith.constant 0 : i32
    return %arg0, %c0_i32, %c0_i32_0, %c0_i32_1 : i32, i32, i32, i32
  }
  func.func @transform_1(%arg0: i32) -> (i32, i32) {
    %c0_i32 = arith.constant 0 : i32
    %c0_i32_0 = arith.constant 0 : i32
    %c0_i32_1 = arith.constant 0 : i32
    return %c0_i32, %c0_i32_0 : i32, i32
  }
  func.func @transform_2(%arg0: i32) -> (i32, i32) {
    %c0_i32 = arith.constant 0 : i32
    %c0_i32_0 = arith.constant 0 : i32
    %c0_i32_1 = arith.constant 0 : i32
    return %c0_i32, %c0_i32_0 : i32, i32
  }
  func.func @transform_3(%arg0: i32) -> (i32, i32, i32) {
    %c0_i32 = arith.constant 0 : i32
    %c0_i32_0 = arith.constant 0 : i32
    %c0_i32_1 = arith.constant 0 : i32
    return %arg0, %c0_i32, %c0_i32_0 : i32, i32, i32
  }
}

</mosaic_0001>

<llo_original>
// kernel: tpu_custom_call.1
$region0: #{tpu_custom_call.1}
  #allocation0 [shape = 'u32[]', space=smem, size = 0x4, offset = 0x4, fixed_abs, tag = 'smem constant byte address 0x4 - core index']
  #allocation1 [shape = 'u32[72,128]{1,0:T(1,128)}', space=vmem, size = 0x9000, scoped, tag = 'internal scratch']
  #allocation2 [shape = 'f32[1,18,18,4]{3,2,1,0:T(8,128)}', space=vmem, size = 0x36000, scoped, tag = 'scratch operand']
  %s0 = inlined_call_operand.vmem [shape: f32[2,16,16,4], index: 0, kind: input, shape index: {}]
  %s1 = inlined_call_operand.vmem [shape: f32[8,36], index: 1, kind: input, shape index: {}]
  %s2 = inlined_call_operand.vmem [shape: f32[8,1], index: 2, kind: input, shape index: {}]
  %s3 = inlined_call_operand.hbm [shape: f32[2,8,256], index: 3, kind: output, shape index: {}]
  %s4 = sld [smem:[#allocation0]]
  $region45: #{tpu_custom_call.1} parent=0
    _
  %s6 = ssub.s32 1, %s4
  %s7 = scalar_select 0, %s6, %s4
  $region1: #{tpu_custom_call.1} parent=0
    #allocation3 [shape = 'u8[16384]{0}', space=vmem, size = 0x4000, scoped, tag = 'output window, operand 0']
    #allocation4 [shape = 's32[2]{0}', space=sflag, size = 0x8, scoped, tag = 'scoped memory for tpu_custom_call.1']
    %8 = vsyncpa [#allocation4], 0
    %s9 = scalar_lea.sflag [#allocation4], 1
    %10 = vsyncpa %s9, 0
    loop: start=0, step=1, limit=4
    $region2: #{tpu_custom_call.1} parent=1 // loop_pre_header
      _
    $region3: #{tpu_custom_call.1} parent=1 // loop_header
      %s12 = sphi 0, %s16
      %p13 = scmp.ge.s32.totalorder %s12, 4
      %s22 = sphi 0, %s24
      %s25 = sphi 0, %s22
      %s26 = sphi 0, %s25
      %s42 = sphi 0, %s26
      %s46 = sphi 0, %s46
      %s48 = sphi 0, %s46
      %s49 = sphi 0, %s48
      %s63 = sphi 0, %s49
      %s67 = sphi 0, %s67
      %s69 = sphi 0, %s67
      %s70 = sphi 0, %s69
      %s84 = sphi 0, %s70
      %s90 = sphi 0, %s92
      %s93 = sphi 0, %s90
      %s94 = sphi 0, %s93
      %s110 = sphi 0, %s94
    $region4: #{tpu_custom_call.1} parent=1 // loop_header_branch
      %15 = sbr.rel (%p13) target = $region8
    $region5: #{tpu_custom_call.1} parent=1 // loop_body
      %s17 = ssub.s32 %s12, 1
      %s18 = ssub.s32 %s12, 2
      %s19 = sadd.s32 %s12, 1
      %s20 = ssub.s32 %s12, %s19
      %p21 = scmp.eq.s32.totalorder %s20, 0
      %s23 = sadd.s32 %s22, 1
      %s24 = scalar_select %p21, %s22, %s23
      %p27 = pneg %p21
      %p28 = scmp.eq.s32.totalorder %s12, 1
      %p29 = por %p27, %p28
      %p30 = scmp.ne.s32.totalorder %s22, %s25
      %p31 = scmp.eq.s32.totalorder %s12, 0
      %p32 = por %p30, %p31
      %p33 = scmp.ne.s32.totalorder %s22, %s25
      %p34 = scmp.eq.s32.totalorder %s17, 1
      %p35 = por %p33, %p34
      %p36 = scmp.ne.s32.totalorder %s25, %s26
      %p37 = scmp.eq.s32.totalorder %s17, 0
      %p38 = por %p36, %p37
      %p39 = scmp.ne.s32.totalorder %s25, %s26
      %p40 = scmp.eq.s32.totalorder %s18, 1
      %p41 = por %p39, %p40
      %p43 = scmp.ne.s32.totalorder %s26, %s42
      %p44 = scmp.eq.s32.totalorder %s18, 0
      %p45 = por %p43, %p44
      %s47 = sadd.s32 %s46, 1
      %p50 = scmp.eq.s32.totalorder %s12, 1
      %p51 = scmp.ne.s32.totalorder %s46, %s48
      %p52 = scmp.eq.s32.totalorder %s12, 0
      %p53 = por %p51, %p52
      %p54 = scmp.ne.s32.totalorder %s46, %s48
      %p55 = scmp.eq.s32.totalorder %s17, 1
      %p56 = por %p54, %p55
      %p57 = scmp.ne.s32.totalorder %s48, %s49
      %p58 = scmp.eq.s32.totalorder %s17, 0
      %p59 = por %p57, %p58
      %p60 = scmp.ne.s32.totalorder %s48, %s49
      %p61 = scmp.eq.s32.totalorder %s18, 1
      %p62 = por %p60, %p61
      %p64 = scmp.ne.s32.totalorder %s49, %s63
      %p65 = scmp.eq.s32.totalorder %s18, 0
      %p66 = por %p64, %p65
      %s68 = sadd.s32 %s67, 1
      %p71 = scmp.eq.s32.totalorder %s12, 1
      %p72 = scmp.ne.s32.totalorder %s67, %s69
      %p73 = scmp.eq.s32.totalorder %s12, 0
      %p74 = por %p72, %p73
      %p75 = scmp.ne.s32.totalorder %s67, %s69
      %p76 = scmp.eq.s32.totalorder %s17, 1
      %p77 = por %p75, %p76
      %p78 = scmp.ne.s32.totalorder %s69, %s70
      %p79 = scmp.eq.s32.totalorder %s17, 0
      %p80 = por %p78, %p79
      %p81 = scmp.ne.s32.totalorder %s69, %s70
      %p82 = scmp.eq.s32.totalorder %s18, 1
      %p83 = por %p81, %p82
      %p85 = scmp.ne.s32.totalorder %s70, %s84
      %p86 = scmp.eq.s32.totalorder %s18, 0
      %p87 = por %p85, %p86
      %s88 = ssub.s32 %s12, %s19
      %p89 = scmp.eq.s32.totalorder %s88, 0
      %s91 = sadd.s32 %s90, 1
      %s92 = scalar_select %p89, %s90, %s91
      %p95 = pneg %p89
      %p96 = scmp.eq.s32.totalorder %s12, 1
      %p97 = por %p95, %p96
      %p98 = scmp.ne.s32.totalorder %s90, %s93
      %p99 = scmp.eq.s32.totalorder %s12, 0
      %p100 = por %p98, %p99
      %p101 = scmp.ne.s32.totalorder %s90, %s93
      %p102 = scmp.eq.s32.totalorder %s17, 1
      %p103 = por %p101, %p102
      %p104 = scmp.ne.s32.totalorder %s93, %s94
      %p105 = scmp.eq.s32.totalorder %s17, 0
      %p106 = por %p104, %p105
      %p107 = scmp.ne.s32.totalorder %s93, %s94
      %p108 = scmp.eq.s32.totalorder %s18, 1
      %p109 = por %p107, %p108
      %p111 = scmp.ne.s32.totalorder %s94, %s110
      %p112 = scmp.eq.s32.totalorder %s18, 0
      %p113 = por %p111, %p112
      %p114 = scmp.le.s32.totalorder 1, %s12
      %p115 = scmp.lt.s32.totalorder %s12, 3
      %p116 = pnand %p114, %p115
      %p117 = pneg %p116
      // Predicated region
      $region9: #{tpu_custom_call.1} parent=5 // pred_check
        _
      $region10: #{tpu_custom_call.1} parent=5 // pred_check_branch
        %119 = sbr.rel (%p116) target = $region12
      $region11: #{tpu_custom_call.1} parent=5 // pred_region
        %s120 = ssub.s32 %s12, 1
        // Predicated region
        $region13: #{tpu_custom_call.1} parent=11 // pred_check
          %p121 = pneg %p59
        $region14: #{tpu_custom_call.1} parent=11 // pred_check_branch
          %123 = sbr.rel (%p121) target = $region16
        $region15: #{tpu_custom_call.1} parent=11 // pred_region
          _
        $region16: #{tpu_custom_call.1} parent=11 // pred_fallthru
          _
        // Predicated region
        $region17: #{tpu_custom_call.1} parent=11 // pred_check
          %p124 = pneg %p80
        $region18: #{tpu_custom_call.1} parent=11 // pred_check_branch
          %126 = sbr.rel (%p124) target = $region20
        $region19: #{tpu_custom_call.1} parent=11 // pred_region
          _
        $region20: #{tpu_custom_call.1} parent=11 // pred_fallthru
          _
      $region12: #{tpu_custom_call.1} parent=5 // pred_fallthru
        _
      %p127 = scmp.lt.s32.totalorder %s12, 2
      // Predicated region
      $region21: #{tpu_custom_call.1} parent=5 // pred_check
        %p128 = pneg %p127
      $region22: #{tpu_custom_call.1} parent=5 // pred_check_branch
        %130 = sbr.rel (%p128) target = $region24
      $region23: #{tpu_custom_call.1} parent=5 // pred_region
        // Predicated region
        $region25: #{tpu_custom_call.1} parent=23 // pred_check
          %p131 = pneg %p32
        $region26: #{tpu_custom_call.1} parent=23 // pred_check_branch
          %133 = sbr.rel (%p131) target = $region28
        $region27: #{tpu_custom_call.1} parent=23 // pred_region
          %p134 = scmp.lt.s32.totalorder %s12, 1
          %s135 = scalar_select %p134, %s12, 1
          %s136 = smul.addr %s135, 32
          %s137 = smul.addr %s136, 8
          %s138 = scalar_lea.vmem %s0, %s137
        $region28: #{tpu_custom_call.1} parent=23 // pred_fallthru
          _
      $region24: #{tpu_custom_call.1} parent=5 // pred_fallthru
        _
      %p139 = scmp.le.s32.totalorder 1, %s12
      %p140 = scmp.lt.s32.totalorder %s12, 3
      %p141 = pnand %p139, %p140
      %p142 = pneg %p141
      // Predicated region
      $region29: #{tpu_custom_call.1} parent=5 // pred_check
        _
      $region30: #{tpu_custom_call.1} parent=5 // pred_check_branch
        %144 = sbr.rel (%p141) target = $region32
      $region31: #{tpu_custom_call.1} parent=5 // pred_region
        %s145 = ssub.s32 %s12, 1
        %p146 = scmp.lt.s32.totalorder %s17, 1
        %s147 = scalar_select %p146, %s17, 1
        %s148 = smul.addr %s147, 32
        %s149 = smul.addr %s148, 8
        %s150 = scalar_lea.vmem %s0, %s149
        %p151 = pneg %p38
        %p152 = pneg %p35
        %p153 = pneg %p59
        %p154 = pneg %p56
        %p155 = pneg %p80
        %p156 = pneg %p77
        %p157 = pneg %p106
        %p158 = pneg %p103
        %s159 = sand.u32 %s93, 1
        %s160 = scalar_lea.sflag [#allocation4], %s159
        %s161 = sand.u32 %s93, 1
        %s162 = smul.addr %s161, 16
        %s163 = scalar_lea.vmem [#allocation3], %s162
        %p164 = scmp.lt.s32.totalorder %s17, 1
        %s165 = scalar_select %p164, %s17, 1
        %s166 = smul.addr %s165, 32
        %s167 = smul.addr %s166, 8
        %s168 = scalar_lea.vmem %s0, %s167
        %vm169 = vcmask 31744
        %170 = vst.msk [vmem:[#allocation2] sm:$0xff] %vm169, 0.0
        %171 = vst.msk [vmem:[#allocation2 + $0x8] sm:$0xff] %vm169, 0.0
        %vm172 = vcmask 25600
        %173 = vst.msk [vmem:[#allocation2 + $0x10] sm:$0x3] %vm172, 0.0
        %s174 = scalar_lea.vmem [#allocation2], 408
        %175 = vst.msk [vmem:[%s174] sm:$0xff] %vm169, 0.0
        %176 = vst.msk [vmem:[%s174 + $0x8] sm:$0xff] %vm169, 0.0
        %177 = vst.msk [vmem:[%s174 + $0x10] sm:$0x3] %vm172, 0.0
        %s178 = scalar_lea.vmem [#allocation2], 24
        %vm179 = vcmask 24576
        %180 = vst.msk [vmem:[%s178] sm:$0x1] %vm179, 0.0
        %181 = vst.msk [vmem:[%s178 + $0x18] sm:$0x1] %vm179, 0.0
        %182 = vst.msk [vmem:[%s178 + $0x30] sm:$0x1] %vm179, 0.0
        %183 = vst.msk [vmem:[%s178 + $0x48] sm:$0x1] %vm179, 0.0
        %184 = vst.msk [vmem:[%s178 + $0x60] sm:$0x1] %vm179, 0.0
        %185 = vst.msk [vmem:[%s178 + $0x78] sm:$0x1] %vm179, 0.0
        %186 = vst.msk [vmem:[%s178 + $0x90] sm:$0x1] %vm179, 0.0
        %187 = vst.msk [vmem:[%s178 + $0xa8] sm:$0x1] %vm179, 0.0
        %188 = vst.msk [vmem:[%s178 + $0xc0] sm:$0x1] %vm179, 0.0
        %189 = vst.msk [vmem:[%s178 + $0xd8] sm:$0x1] %vm179, 0.0
        %190 = vst.msk [vmem:[%s178 + $0xf0] sm:$0x1] %vm179, 0.0
        %191 = vst.msk [vmem:[%s178 + $0x108] sm:$0x1] %vm179, 0.0
        %192 = vst.msk [vmem:[%s178 + $0x120] sm:$0x1] %vm179, 0.0
        %193 = vst.msk [vmem:[%s178 + $0x138] sm:$0x1] %vm179, 0.0
        %194 = vst.msk [vmem:[%s178 + $0x150] sm:$0x1] %vm179, 0.0
        %195 = vst.msk [vmem:[%s178 + $0x168] sm:$0x1] %vm179, 0.0
        %196 = vst.msk [vmem:[%s178 + $0x11] sm:$0x1] %vm179, 0.0
        %197 = vst.msk [vmem:[%s178 + $0x29] sm:$0x1] %vm179, 0.0
        %198 = vst.msk [vmem:[%s178 + $0x41] sm:$0x1] %vm179, 0.0
        %199 = vst.msk [vmem:[%s178 + $0x59] sm:$0x1] %vm179, 0.0
        %200 = vst.msk [vmem:[%s178 + $0x71] sm:$0x1] %vm179, 0.0
        %201 = vst.msk [vmem:[%s178 + $0x89] sm:$0x1] %vm179, 0.0
        %202 = vst.msk [vmem:[%s178 + $0xa1] sm:$0x1] %vm179, 0.0
        %203 = vst.msk [vmem:[%s178 + $0xb9] sm:$0x1] %vm179, 0.0
        %204 = vst.msk [vmem:[%s178 + $0xd1] sm:$0x1] %vm179, 0.0
        %205 = vst.msk [vmem:[%s178 + $0xe9] sm:$0x1] %vm179, 0.0
        %206 = vst.msk [vmem:[%s178 + $0x101] sm:$0x1] %vm179, 0.0
        %207 = vst.msk [vmem:[%s178 + $0x119] sm:$0x1] %vm179, 0.0
        %208 = vst.msk [vmem:[%s178 + $0x131] sm:$0x1] %vm179, 0.0
        %209 = vst.msk [vmem:[%s178 + $0x149] sm:$0x1] %vm179, 0.0
        %210 = vst.msk [vmem:[%s178 + $0x161] sm:$0x1] %vm179, 0.0
        %211 = vst.msk [vmem:[%s178 + $0x179] sm:$0x1] %vm179, 0.0
        %v212 = vld [vmem:[%s168] sm:$0xff]
        %v213 = vld [vmem:[%s168 + $0x8] sm:$0xff]
        %v214 = vld [vmem:[%s168 + $0x10] sm:$0xff]
        %v215 = vld [vmem:[%s168 + $0x18] sm:$0xff]
        %v216 = vld [vmem:[%s168 + $0x20] sm:$0xff]
        %v217 = vld [vmem:[%s168 + $0x28] sm:$0xff]
        %v218 = vld [vmem:[%s168 + $0x30] sm:$0xff]
        %v219 = vld [vmem:[%s168 + $0x38] sm:$0xff]
        %v220 = vld [vmem:[%s168 + $0x40] sm:$0xff]
        %v221 = vld [vmem:[%s168 + $0x48] sm:$0xff]
        %v222 = vld [vmem:[%s168 + $0x50] sm:$0xff]
        %v223 = vld [vmem:[%s168 + $0x58] sm:$0xff]
        %v224 = vld [vmem:[%s168 + $0x60] sm:$0xff]
        %v225 = vld [vmem:[%s168 + $0x68] sm:$0xff]
        %v226 = vld [vmem:[%s168 + $0x70] sm:$0xff]
        %v227 = vld [vmem:[%s168 + $0x78] sm:$0xff]
        %v228 = vld [vmem:[%s168 + $0x80] sm:$0xff]
        %v229 = vld [vmem:[%s168 + $0x88] sm:$0xff]
        %v230 = vld [vmem:[%s168 + $0x90] sm:$0xff]
        %v231 = vld [vmem:[%s168 + $0x98] sm:$0xff]
        %v232 = vld [vmem:[%s168 + $0xa0] sm:$0xff]
        %v233 = vld [vmem:[%s168 + $0xa8] sm:$0xff]
        %v234 = vld [vmem:[%s168 + $0xb0] sm:$0xff]
        %v235 = vld [vmem:[%s168 + $0xb8] sm:$0xff]
        %v236 = vld [vmem:[%s168 + $0xc0] sm:$0xff]
        %v237 = vld [vmem:[%s168 + $0xc8] sm:$0xff]
        %v238 = vld [vmem:[%s168 + $0xd0] sm:$0xff]
        %v239 = vld [vmem:[%s168 + $0xd8] sm:$0xff]
        %v240 = vld [vmem:[%s168 + $0xe0] sm:$0xff]
        %v241 = vld [vmem:[%s168 + $0xe8] sm:$0xff]
        %v242 = vld [vmem:[%s168 + $0xf0] sm:$0xff]
        %v243 = vld [vmem:[%s168 + $0xf8] sm:$0xff]
        %244 = vst.msk [vmem:[%s178 + $0x1] sm:$0xff] %vm169, %v212
        %245 = vst.msk [vmem:[%s178 + $0x9] sm:$0xff] %vm169, %v213
        %246 = vst.msk [vmem:[%s178 + $0x19] sm:$0xff] %vm169, %v214
        %247 = vst.msk [vmem:[%s178 + $0x21] sm:$0xff] %vm169, %v215
        %248 = vst.msk [vmem:[%s178 + $0x31] sm:$0xff] %vm169, %v216
        %249 = vst.msk [vmem:[%s178 + $0x39] sm:$0xff] %vm169, %v217
        %250 = vst.msk [vmem:[%s178 + $0x49] sm:$0xff] %vm169, %v218
        %251 = vst.msk [vmem:[%s178 + $0x51] sm:$0xff] %vm169, %v219
        %252 = vst.msk [vmem:[%s178 + $0x61] sm:$0xff] %vm169, %v220
        %253 = vst.msk [vmem:[%s178 + $0x69] sm:$0xff] %vm169, %v221
        %254 = vst.msk [vmem:[%s178 + $0x79] sm:$0xff] %vm169, %v222
        %255 = vst.msk [vmem:[%s178 + $0x81] sm:$0xff] %vm169, %v223
        %256 = vst.msk [vmem:[%s178 + $0x91] sm:$0xff] %vm169, %v224
        %257 = vst.msk [vmem:[%s178 + $0x99] sm:$0xff] %vm169, %v225
        %258 = vst.msk [vmem:[%s178 + $0xa9] sm:$0xff] %vm169, %v226
        %259 = vst.msk [vmem:[%s178 + $0xb1] sm:$0xff] %vm169, %v227
        %260 = vst.msk [vmem:[%s178 + $0xc1] sm:$0xff] %vm169, %v228
        %261 = vst.msk [vmem:[%s178 + $0xc9] sm:$0xff] %vm169, %v229
        %262 = vst.msk [vmem:[%s178 + $0xd9] sm:$0xff] %vm169, %v230
        %263 = vst.msk [vmem:[%s178 + $0xe1] sm:$0xff] %vm169, %v231
        %264 = vst.msk [vmem:[%s178 + $0xf1] sm:$0xff] %vm169, %v232
        %265 = vst.msk [vmem:[%s178 + $0xf9] sm:$0xff] %vm169, %v233
        %266 = vst.msk [vmem:[%s178 + $0x109] sm:$0xff] %vm169, %v234
        %267 = vst.msk [vmem:[%s178 + $0x111] sm:$0xff] %vm169, %v235
        %268 = vst.msk [vmem:[%s178 + $0x121] sm:$0xff] %vm169, %v236
        %269 = vst.msk [vmem:[%s178 + $0x129] sm:$0xff] %vm169, %v237
        %270 = vst.msk [vmem:[%s178 + $0x139] sm:$0xff] %vm169, %v238
        %271 = vst.msk [vmem:[%s178 + $0x141] sm:$0xff] %vm169, %v239
        %272 = vst.msk [vmem:[%s178 + $0x151] sm:$0xff] %vm169, %v240
        %273 = vst.msk [vmem:[%s178 + $0x159] sm:$0xff] %vm169, %v241
        %274 = vst.msk [vmem:[%s178 + $0x169] sm:$0xff] %vm169, %v242
        %275 = vst.msk [vmem:[%s178 + $0x171] sm:$0xff] %vm169, %v243
        %v276 = vld [vmem:[#allocation2] sm:$0xff]
        %v277 = vld [vmem:[#allocation2 + $0x8] sm:$0xff]
        %v278 = vld [vmem:[#allocation2 + $0x18] sm:$0xff]
        %v279 = vld [vmem:[#allocation2 + $0x20] sm:$0xff]
        %v280 = vld [vmem:[#allocation2 + $0x30] sm:$0xff]
        %v281 = vld [vmem:[#allocation2 + $0x38] sm:$0xff]
        %v282 = vld [vmem:[#allocation2 + $0x48] sm:$0xff]
        %v283 = vld [vmem:[#allocation2 + $0x50] sm:$0xff]
        %v284 = vld [vmem:[#allocation2 + $0x60] sm:$0xff]
        %v285 = vld [vmem:[#allocation2 + $0x68] sm:$0xff]
        %v286 = vld [vmem:[#allocation2 + $0x78] sm:$0xff]
        %v287 = vld [vmem:[#allocation2 + $0x80] sm:$0xff]
        %v288 = vld [vmem:[#allocation2 + $0x90] sm:$0xff]
        %v289 = vld [vmem:[#allocation2 + $0x98] sm:$0xff]
        %v290 = vld [vmem:[#allocation2 + $0xa8] sm:$0xff]
        %v291 = vld [vmem:[#allocation2 + $0xb0] sm:$0xff]
        %v292 = vld [vmem:[#allocation2 + $0xc0] sm:$0xff]
        %v293 = vld [vmem:[#allocation2 + $0xc8] sm:$0xff]
        %v294 = vld [vmem:[#allocation2 + $0xd8] sm:$0xff]
        %v295 = vld [vmem:[#allocation2 + $0xe0] sm:$0xff]
        %v296 = vld [vmem:[#allocation2 + $0xf0] sm:$0xff]
        %v297 = vld [vmem:[#allocation2 + $0xf8] sm:$0xff]
        %v298 = vld [vmem:[#allocation2 + $0x108] sm:$0xff]
        %v299 = vld [vmem:[#allocation2 + $0x110] sm:$0xff]
        %v300 = vld [vmem:[#allocation2 + $0x120] sm:$0xff]
        %v301 = vld [vmem:[#allocation2 + $0x128] sm:$0xff]
        %v302 = vld [vmem:[#allocation2 + $0x138] sm:$0xff]
        %v303 = vld [vmem:[#allocation2 + $0x140] sm:$0xff]
        %v304 = vld [vmem:[#allocation2 + $0x150] sm:$0xff]
        %v305 = vld [vmem:[#allocation2 + $0x158] sm:$0xff]
        %v306 = vld [vmem:[#allocation2 + $0x168] sm:$0xff]
        %v307 = vld [vmem:[#allocation2 + $0x170] sm:$0xff]
        %v308 = vld [vmem:[%s1] sm:$0xff]
        %v309 = vld [vmem:[#allocation2 + $0x1] sm:$0xff]
        %v310 = vld [vmem:[#allocation2 + $0x9] sm:$0xff]
        %v311 = vld [vmem:[#allocation2 + $0x19] sm:$0xff]
        %v312 = vld [vmem:[#allocation2 + $0x21] sm:$0xff]
        %v313 = vld [vmem:[#allocation2 + $0x31] sm:$0xff]
        %v314 = vld [vmem:[#allocation2 + $0x39] sm:$0xff]
        %v315 = vld [vmem:[#allocation2 + $0x49] sm:$0xff]
        %v316 = vld [vmem:[#allocation2 + $0x51] sm:$0xff]
        %v317 = vld [vmem:[#allocation2 + $0x61] sm:$0xff]
        %v318 = vld [vmem:[#allocation2 + $0x69] sm:$0xff]
        %v319 = vld [vmem:[#allocation2 + $0x79] sm:$0xff]
        %v320 = vld [vmem:[#allocation2 + $0x81] sm:$0xff]
        %v321 = vld [vmem:[#allocation2 + $0x91] sm:$0xff]
        %v322 = vld [vmem:[#allocation2 + $0x99] sm:$0xff]
        %v323 = vld [vmem:[#allocation2 + $0xa9] sm:$0xff]
        %v324 = vld [vmem:[#allocation2 + $0xb1] sm:$0xff]
        %v325 = vld [vmem:[#allocation2 + $0xc1] sm:$0xff]
        %v326 = vld [vmem:[#allocation2 + $0xc9] sm:$0xff]
        %v327 = vld [vmem:[#allocation2 + $0xd9] sm:$0xff]
        %v328 = vld [vmem:[#allocation2 + $0xe1] sm:$0xff]
        %v329 = vld [vmem:[#allocation2 + $0xf1] sm:$0xff]
        %v330 = vld [vmem:[#allocation2 + $0xf9] sm:$0xff]
        %v331 = vld [vmem:[#allocation2 + $0x109] sm:$0xff]
        %v332 = vld [vmem:[#allocation2 + $0x111] sm:$0xff]
        %v333 = vld [vmem:[#allocation2 + $0x121] sm:$0xff]
        %v334 = vld [vmem:[#allocation2 + $0x129] sm:$0xff]
        %v335 = vld [vmem:[#allocation2 + $0x139] sm:$0xff]
        %v336 = vld [vmem:[#allocation2 + $0x141] sm:$0xff]
        %v337 = vld [vmem:[#allocation2 + $0x151] sm:$0xff]
        %v338 = vld [vmem:[#allocation2 + $0x159] sm:$0xff]
        %v339 = vld [vmem:[#allocation2 + $0x169] sm:$0xff]
        %v340 = vld [vmem:[#allocation2 + $0x171] sm:$0xff]
        %342 = vrot.lane.b32.xlu0 %v308, 124
        %v343 = vpop.permute.xlu0 %342
        %v344 = vsel %vm169, %v343, 0
        %v347 = vsel %vm169, %v309, 0
        %v350 = vsel %vm169, %v310, 0
        %v353 = vsel %vm169, %v311, 0
        %v356 = vsel %vm169, %v312, 0
        %v359 = vsel %vm169, %v313, 0
        %v362 = vsel %vm169, %v314, 0
        %v365 = vsel %vm169, %v315, 0
        %v368 = vsel %vm169, %v316, 0
        %v371 = vsel %vm169, %v317, 0
        %v374 = vsel %vm169, %v318, 0
        %v377 = vsel %vm169, %v319, 0
        %v380 = vsel %vm169, %v320, 0
        %v383 = vsel %vm169, %v321, 0
        %v386 = vsel %vm169, %v322, 0
        %v389 = vsel %vm169, %v323, 0
        %v392 = vsel %vm169, %v324, 0
        %v395 = vsel %vm169, %v325, 0
        %v398 = vsel %vm169, %v326, 0
        %v401 = vsel %vm169, %v327, 0
        %v404 = vsel %vm169, %v328, 0
        %v407 = vsel %vm169, %v329, 0
        %v410 = vsel %vm169, %v330, 0
        %v413 = vsel %vm169, %v331, 0
        %v416 = vsel %vm169, %v332, 0
        %v419 = vsel %vm169, %v333, 0
        %v422 = vsel %vm169, %v334, 0
        %v425 = vsel %vm169, %v335, 0
        %v428 = vsel %vm169, %v336, 0
        %v431 = vsel %vm169, %v337, 0
        %v434 = vsel %vm169, %v338, 0
        %v437 = vsel %vm169, %v339, 0
        %v440 = vsel %vm169, %v340, 0
        %442 = vmatpush.xpose.msra.mxu0 %v392
        %443 = vmatpush.xpose.msra.mxu0 %v389
        %444 = vmatpush.xpose.msra.mxu0 %v386
        %445 = vmatpush.xpose.msra.mxu0 %v383
        %446 = vmatpush.xpose.msra.mxu0 %v380
        %447 = vmatpush.xpose.msra.mxu0 %v377
        %448 = vmatpush.xpose.msra.mxu0 %v374
        %449 = vmatpush.xpose.msra.mxu0 %v371
        %450 = vmatpush.xpose.msra.mxu0 %v368
        %451 = vmatpush.xpose.msra.mxu0 %v365
        %452 = vmatpush.xpose.msra.mxu0 %v362
        %453 = vmatpush.xpose.msra.mxu0 %v359
        %454 = vmatpush.xpose.msra.mxu0 %v356
        %455 = vmatpush.xpose.msra.mxu0 %v353
        %456 = vmatpush.xpose.msra.mxu0 %v350
        %457 = vmatpush.xpose.msra.mxu0 %v347
        %458 = vmatmul.f32.gmra.mxu0 %v344
        %v459 = vpop.f32.mrf.mxu0
        %v460 = vadd.f32 0.0, %v459
        %461 = vdwg.mxu0
        %462 = vmatpush.xpose.msra.mxu0 %v440
        %463 = vmatpush.xpose.msra.mxu0 %v437
        %464 = vmatpush.xpose.msra.mxu0 %v434
        %465 = vmatpush.xpose.msra.mxu0 %v431
        %466 = vmatpush.xpose.msra.mxu0 %v428
        %467 = vmatpush.xpose.msra.mxu0 %v425
        %468 = vmatpush.xpose.msra.mxu0 %v422
        %469 = vmatpush.xpose.msra.mxu0 %v419
        %470 = vmatpush.xpose.msra.mxu0 %v416
        %471 = vmatpush.xpose.msra.mxu0 %v413
        %472 = vmatpush.xpose.msra.mxu0 %v410
        %473 = vmatpush.xpose.msra.mxu0 %v407
        %474 = vmatpush.xpose.msra.mxu0 %v404
        %475 = vmatpush.xpose.msra.mxu0 %v401
        %476 = vmatpush.xpose.msra.mxu0 %v398
        %477 = vmatpush.xpose.msra.mxu0 %v395
        %478 = vmatmul.f32.gmra.mxu0 %v344
        %v479 = vpop.f32.mrf.mxu0
        %v480 = vadd.f32 0.0, %v479
        %481 = vdwg.mxu0
        %v482 = vsel %vm169, %v308, 0
        %v485 = vsel %vm169, %v276, 0
        %v488 = vsel %vm169, %v277, 0
        %v491 = vsel %vm169, %v278, 0
        %v494 = vsel %vm169, %v279, 0
        %v497 = vsel %vm169, %v280, 0
        %v500 = vsel %vm169, %v281, 0
        %v503 = vsel %vm169, %v282, 0
        %v506 = vsel %vm169, %v283, 0
        %v509 = vsel %vm169, %v284, 0
        %v512 = vsel %vm169, %v285, 0
        %v515 = vsel %vm169, %v286, 0
        %v518 = vsel %vm169, %v287, 0
        %v521 = vsel %vm169, %v288, 0
        %v524 = vsel %vm169, %v289, 0
        %v527 = vsel %vm169, %v290, 0
        %v530 = vsel %vm169, %v291, 0
        %v533 = vsel %vm169, %v292, 0
        %v536 = vsel %vm169, %v293, 0
        %v539 = vsel %vm169, %v294, 0
        %v542 = vsel %vm169, %v295, 0
        %v545 = vsel %vm169, %v296, 0
        %v548 = vsel %vm169, %v297, 0
        %v551 = vsel %vm169, %v298, 0
        %v554 = vsel %vm169, %v299, 0
        %v557 = vsel %vm169, %v300, 0
        %v560 = vsel %vm169, %v301, 0
        %v563 = vsel %vm169, %v302, 0
        %v566 = vsel %vm169, %v303, 0
        %v569 = vsel %vm169, %v304, 0
        %v572 = vsel %vm169, %v305, 0
        %v575 = vsel %vm169, %v306, 0
        %v578 = vsel %vm169, %v307, 0
        %580 = vmatpush.xpose.msra.mxu0 %v530
        %581 = vmatpush.xpose.msra.mxu0 %v527
        %582 = vmatpush.xpose.msra.mxu0 %v524
        %583 = vmatpush.xpose.msra.mxu0 %v521
        %584 = vmatpush.xpose.msra.mxu0 %v518
        %585 = vmatpush.xpose.msra.mxu0 %v515
        %586 = vmatpush.xpose.msra.mxu0 %v512
        %587 = vmatpush.xpose.msra.mxu0 %v509
        %588 = vmatpush.xpose.msra.mxu0 %v506
        %589 = vmatpush.xpose.msra.mxu0 %v503
        %590 = vmatpush.xpose.msra.mxu0 %v500
        %591 = vmatpush.xpose.msra.mxu0 %v497
        %592 = vmatpush.xpose.msra.mxu0 %v494
        %593 = vmatpush.xpose.msra.mxu0 %v491
        %594 = vmatpush.xpose.msra.mxu0 %v488
        %595 = vmatpush.xpose.msra.mxu0 %v485
        %596 = vmatmul.f32.gmra.mxu0 %v482
        %v597 = vpop.f32.mrf.mxu0
        %v598 = vadd.f32 %v460, %v597
        %599 = vdwg.mxu0
        %600 = vmatpush.xpose.msra.mxu0 %v578
        %601 = vmatpush.xpose.msra.mxu0 %v575
        %602 = vmatpush.xpose.msra.mxu0 %v572
        %603 = vmatpush.xpose.msra.mxu0 %v569
        %604 = vmatpush.xpose.msra.mxu0 %v566
        %605 = vmatpush.xpose.msra.mxu0 %v563
        %606 = vmatpush.xpose.msra.mxu0 %v560
        %607 = vmatpush.xpose.msra.mxu0 %v557
        %608 = vmatpush.xpose.msra.mxu0 %v554
        %609 = vmatpush.xpose.msra.mxu0 %v551
        %610 = vmatpush.xpose.msra.mxu0 %v548
        %611 = vmatpush.xpose.msra.mxu0 %v545
        %612 = vmatpush.xpose.msra.mxu0 %v542
        %613 = vmatpush.xpose.msra.mxu0 %v539
        %614 = vmatpush.xpose.msra.mxu0 %v536
        %615 = vmatpush.xpose.msra.mxu0 %v533
        %616 = vmatmul.f32.gmra.mxu0 %v482
        %v617 = vpop.f32.mrf.mxu0
        %v618 = vadd.f32 %v480, %v617
        %619 = vdwg.mxu0
        %v620 = vld [vmem:[#allocation2 + $0x2] sm:$0xff]
        %v621 = vld [vmem:[#allocation2 + $0xa] sm:$0xff]
        %v622 = vld [vmem:[#allocation2 + $0x1a] sm:$0xff]
        %v623 = vld [vmem:[#allocation2 + $0x22] sm:$0xff]
        %v624 = vld [vmem:[#allocation2 + $0x32] sm:$0xff]
        %v625 = vld [vmem:[#allocation2 + $0x3a] sm:$0xff]
        %v626 = vld [vmem:[#allocation2 + $0x4a] sm:$0xff]
        %v627 = vld [vmem:[#allocation2 + $0x52] sm:$0xff]
        %v628 = vld [vmem:[#allocation2 + $0x62] sm:$0xff]
        %v629 = vld [vmem:[#allocation2 + $0x6a] sm:$0xff]
        %v630 = vld [vmem:[#allocation2 + $0x7a] sm:$0xff]
        %v631 = vld [vmem:[#allocation2 + $0x82] sm:$0xff]
        %v632 = vld [vmem:[#allocation2 + $0x92] sm:$0xff]
        %v633 = vld [vmem:[#allocation2 + $0x9a] sm:$0xff]
        %v634 = vld [vmem:[#allocation2 + $0xaa] sm:$0xff]
        %v635 = vld [vmem:[#allocation2 + $0xb2] sm:$0xff]
        %v636 = vld [vmem:[#allocation2 + $0xc2] sm:$0xff]
        %v637 = vld [vmem:[#allocation2 + $0xca] sm:$0xff]
        %v638 = vld [vmem:[#allocation2 + $0xda] sm:$0xff]
        %v639 = vld [vmem:[#allocation2 + $0xe2] sm:$0xff]
        %v640 = vld [vmem:[#allocation2 + $0xf2] sm:$0xff]
        %v641 = vld [vmem:[#allocation2 + $0xfa] sm:$0xff]
        %v642 = vld [vmem:[#allocation2 + $0x10a] sm:$0xff]
        %v643 = vld [vmem:[#allocation2 + $0x112] sm:$0xff]
        %v644 = vld [vmem:[#allocation2 + $0x122] sm:$0xff]
        %v645 = vld [vmem:[#allocation2 + $0x12a] sm:$0xff]
        %v646 = vld [vmem:[#allocation2 + $0x13a] sm:$0xff]
        %v647 = vld [vmem:[#allocation2 + $0x142] sm:$0xff]
        %v648 = vld [vmem:[#allocation2 + $0x152] sm:$0xff]
        %v649 = vld [vmem:[#allocation2 + $0x15a] sm:$0xff]
        %v650 = vld [vmem:[#allocation2 + $0x16a] sm:$0xff]
        %v651 = vld [vmem:[#allocation2 + $0x172] sm:$0xff]
        %652 = vrot.lane.b32.xlu0 %v308, 120
        %v653 = vpop.permute.xlu0 %652
        %v654 = vsel %vm169, %v653, 0
        %v657 = vsel %vm169, %v620, 0
        %v660 = vsel %vm169, %v621, 0
        %v663 = vsel %vm169, %v622, 0
        %v666 = vsel %vm169, %v623, 0
        %v669 = vsel %vm169, %v624, 0
        %v672 = vsel %vm169, %v625, 0
        %v675 = vsel %vm169, %v626, 0
        %v678 = vsel %vm169, %v627, 0
        %v681 = vsel %vm169, %v628, 0
        %v684 = vsel %vm169, %v629, 0
        %v687 = vsel %vm169, %v630, 0
        %v690 = vsel %vm169, %v631, 0
        %v693 = vsel %vm169, %v632, 0
        %v696 = vsel %vm169, %v633, 0
        %v699 = vsel %vm169, %v634, 0
        %v702 = vsel %vm169, %v635, 0
        %v705 = vsel %vm169, %v636, 0
        %v708 = vsel %vm169, %v637, 0
        %v711 = vsel %vm169, %v638, 0
        %v714 = vsel %vm169, %v639, 0
        %v717 = vsel %vm169, %v640, 0
        %v720 = vsel %vm169, %v641, 0
        %v723 = vsel %vm169, %v642, 0
        %v726 = vsel %vm169, %v643, 0
        %v729 = vsel %vm169, %v644, 0
        %v732 = vsel %vm169, %v645, 0
        %v735 = vsel %vm169, %v646, 0
        %v738 = vsel %vm169, %v647, 0
        %v741 = vsel %vm169, %v648, 0
        %v744 = vsel %vm169, %v649, 0
        %v747 = vsel %vm169, %v650, 0
        %v750 = vsel %vm169, %v651, 0
        %752 = vmatpush.xpose.msra.mxu0 %v702
        %753 = vmatpush.xpose.msra.mxu0 %v699
        %754 = vmatpush.xpose.msra.mxu0 %v696
        %755 = vmatpush.xpose.msra.mxu0 %v693
        %756 = vmatpush.xpose.msra.mxu0 %v690
        %757 = vmatpush.xpose.msra.mxu0 %v687
        %758 = vmatpush.xpose.msra.mxu0 %v684
        %759 = vmatpush.xpose.msra.mxu0 %v681
        %760 = vmatpush.xpose.msra.mxu0 %v678
        %761 = vmatpush.xpose.msra.mxu0 %v675
        %762 = vmatpush.xpose.msra.mxu0 %v672
        %763 = vmatpush.xpose.msra.mxu0 %v669
        %764 = vmatpush.xpose.msra.mxu0 %v666
        %765 = vmatpush.xpose.msra.mxu0 %v663
        %766 = vmatpush.xpose.msra.mxu0 %v660
        %767 = vmatpush.xpose.msra.mxu0 %v657
        %768 = vmatmul.f32.gmra.mxu0 %v654
        %v769 = vpop.f32.mrf.mxu0
        %v770 = vadd.f32 0.0, %v769
        %771 = vdwg.mxu0
        %772 = vmatpush.xpose.msra.mxu0 %v750
        %773 = vmatpush.xpose.msra.mxu0 %v747
        %774 = vmatpush.xpose.msra.mxu0 %v744
        %775 = vmatpush.xpose.msra.mxu0 %v741
        %776 = vmatpush.xpose.msra.mxu0 %v738
        %777 = vmatpush.xpose.msra.mxu0 %v735
        %778 = vmatpush.xpose.msra.mxu0 %v732
        %779 = vmatpush.xpose.msra.mxu0 %v729
        %780 = vmatpush.xpose.msra.mxu0 %v726
        %781 = vmatpush.xpose.msra.mxu0 %v723
        %782 = vmatpush.xpose.msra.mxu0 %v720
        %783 = vmatpush.xpose.msra.mxu0 %v717
        %784 = vmatpush.xpose.msra.mxu0 %v714
        %785 = vmatpush.xpose.msra.mxu0 %v711
        %786 = vmatpush.xpose.msra.mxu0 %v708
        %787 = vmatpush.xpose.msra.mxu0 %v705
        %788 = vmatmul.f32.gmra.mxu0 %v654
        %v789 = vpop.f32.mrf.mxu0
        %v790 = vadd.f32 0.0, %v789
        %791 = vdwg.mxu0
        %v792 = vadd.f32 %v598, %v770
        %v793 = vadd.f32 %v618, %v790
        %v794 = vld [vmem:[%s178] sm:$0xff]
        %v795 = vld [vmem:[%s178 + $0x8] sm:$0xff]
        %v796 = vld [vmem:[%s178 + $0x18] sm:$0xff]
        %v797 = vld [vmem:[%s178 + $0x20] sm:$0xff]
        %v798 = vld [vmem:[%s178 + $0x30] sm:$0xff]
        %v799 = vld [vmem:[%s178 + $0x38] sm:$0xff]
        %v800 = vld [vmem:[%s178 + $0x48] sm:$0xff]
        %v801 = vld [vmem:[%s178 + $0x50] sm:$0xff]
        %v802 = vld [vmem:[%s178 + $0x60] sm:$0xff]
        %v803 = vld [vmem:[%s178 + $0x68] sm:$0xff]
        %v804 = vld [vmem:[%s178 + $0x78] sm:$0xff]
        %v805 = vld [vmem:[%s178 + $0x80] sm:$0xff]
        %v806 = vld [vmem:[%s178 + $0x90] sm:$0xff]
        %v807 = vld [vmem:[%s178 + $0x98] sm:$0xff]
        %v808 = vld [vmem:[%s178 + $0xa8] sm:$0xff]
        %v809 = vld [vmem:[%s178 + $0xb0] sm:$0xff]
        %v810 = vld [vmem:[%s178 + $0xc0] sm:$0xff]
        %v811 = vld [vmem:[%s178 + $0xc8] sm:$0xff]
        %v812 = vld [vmem:[%s178 + $0xd8] sm:$0xff]
        %v813 = vld [vmem:[%s178 + $0xe0] sm:$0xff]
        %v814 = vld [vmem:[%s178 + $0xf0] sm:$0xff]
        %v815 = vld [vmem:[%s178 + $0xf8] sm:$0xff]
        %v816 = vld [vmem:[%s178 + $0x108] sm:$0xff]
        %v817 = vld [vmem:[%s178 + $0x110] sm:$0xff]
        %v818 = vld [vmem:[%s178 + $0x120] sm:$0xff]
        %v819 = vld [vmem:[%s178 + $0x128] sm:$0xff]
        %v820 = vld [vmem:[%s178 + $0x138] sm:$0xff]
        %v821 = vld [vmem:[%s178 + $0x140] sm:$0xff]
        %v822 = vld [vmem:[%s178 + $0x150] sm:$0xff]
        %v823 = vld [vmem:[%s178 + $0x158] sm:$0xff]
        %v824 = vld [vmem:[%s178 + $0x168] sm:$0xff]
        %v825 = vld [vmem:[%s178 + $0x170] sm:$0xff]
        %826 = vrot.lane.b32.xlu0 %v308, 116
        %v827 = vpop.permute.xlu0 %826
        %v828 = vsel %vm169, %v827, 0
        %v831 = vsel %vm169, %v794, 0
        %v834 = vsel %vm169, %v795, 0
        %v837 = vsel %vm169, %v796, 0
        %v840 = vsel %vm169, %v797, 0
        %v843 = vsel %vm169, %v798, 0
        %v846 = vsel %vm169, %v799, 0
        %v849 = vsel %vm169, %v800, 0
        %v852 = vsel %vm169, %v801, 0
        %v855 = vsel %vm169, %v802, 0
        %v858 = vsel %vm169, %v803, 0
        %v861 = vsel %vm169, %v804, 0
        %v864 = vsel %vm169, %v805, 0
        %v867 = vsel %vm169, %v806, 0
        %v870 = vsel %vm169, %v807, 0
        %v873 = vsel %vm169, %v808, 0
        %v876 = vsel %vm169, %v809, 0
        %v879 = vsel %vm169, %v810, 0
        %v882 = vsel %vm169, %v811, 0
        %v885 = vsel %vm169, %v812, 0
        %v888 = vsel %vm169, %v813, 0
        %v891 = vsel %vm169, %v814, 0
        %v894 = vsel %vm169, %v815, 0
        %v897 = vsel %vm169, %v816, 0
        %v900 = vsel %vm169, %v817, 0
        %v903 = vsel %vm169, %v818, 0
        %v906 = vsel %vm169, %v819, 0
        %v909 = vsel %vm169, %v820, 0
        %v912 = vsel %vm169, %v821, 0
        %v915 = vsel %vm169, %v822, 0
        %v918 = vsel %vm169, %v823, 0
        %v921 = vsel %vm169, %v824, 0
        %v924 = vsel %vm169, %v825, 0
        %926 = vmatpush.xpose.msra.mxu0 %v876
        %927 = vmatpush.xpose.msra.mxu0 %v873
        %928 = vmatpush.xpose.msra.mxu0 %v870
        %929 = vmatpush.xpose.msra.mxu0 %v867
        %930 = vmatpush.xpose.msra.mxu0 %v864
        %931 = vmatpush.xpose.msra.mxu0 %v861
        %932 = vmatpush.xpose.msra.mxu0 %v858
        %933 = vmatpush.xpose.msra.mxu0 %v855
        %934 = vmatpush.xpose.msra.mxu0 %v852
        %935 = vmatpush.xpose.msra.mxu0 %v849
        %936 = vmatpush.xpose.msra.mxu0 %v846
        %937 = vmatpush.xpose.msra.mxu0 %v843
        %938 = vmatpush.xpose.msra.mxu0 %v840
        %939 = vmatpush.xpose.msra.mxu0 %v837
        %940 = vmatpush.xpose.msra.mxu0 %v834
        %941 = vmatpush.xpose.msra.mxu0 %v831
        %942 = vmatmul.f32.gmra.mxu0 %v828
        %v943 = vpop.f32.mrf.mxu0
        %v944 = vadd.f32 0.0, %v943
        %945 = vdwg.mxu0
        %946 = vmatpush.xpose.msra.mxu0 %v924
        %947 = vmatpush.xpose.msra.mxu0 %v921
        %948 = vmatpush.xpose.msra.mxu0 %v918
        %949 = vmatpush.xpose.msra.mxu0 %v915
        %950 = vmatpush.xpose.msra.mxu0 %v912
        %951 = vmatpush.xpose.msra.mxu0 %v909
        %952 = vmatpush.xpose.msra.mxu0 %v906
        %953 = vmatpush.xpose.msra.mxu0 %v903
        %954 = vmatpush.xpose.msra.mxu0 %v900
        %955 = vmatpush.xpose.msra.mxu0 %v897
        %956 = vmatpush.xpose.msra.mxu0 %v894
        %957 = vmatpush.xpose.msra.mxu0 %v891
        %958 = vmatpush.xpose.msra.mxu0 %v888
        %959 = vmatpush.xpose.msra.mxu0 %v885
        %960 = vmatpush.xpose.msra.mxu0 %v882
        %961 = vmatpush.xpose.msra.mxu0 %v879
        %962 = vmatmul.f32.gmra.mxu0 %v828
        %v963 = vpop.f32.mrf.mxu0
        %v964 = vadd.f32 0.0, %v963
        %965 = vdwg.mxu0
        %v966 = vadd.f32 %v792, %v944
        %v967 = vadd.f32 %v793, %v964
        %v968 = vld [vmem:[%s178 + $0x1] sm:$0xff]
        %v969 = vld [vmem:[%s178 + $0x9] sm:$0xff]
        %v970 = vld [vmem:[%s178 + $0x19] sm:$0xff]
        %v971 = vld [vmem:[%s178 + $0x21] sm:$0xff]
        %v972 = vld [vmem:[%s178 + $0x31] sm:$0xff]
        %v973 = vld [vmem:[%s178 + $0x39] sm:$0xff]
        %v974 = vld [vmem:[%s178 + $0x49] sm:$0xff]
        %v975 = vld [vmem:[%s178 + $0x51] sm:$0xff]
        %v976 = vld [vmem:[%s178 + $0x61] sm:$0xff]
        %v977 = vld [vmem:[%s178 + $0x69] sm:$0xff]
        %v978 = vld [vmem:[%s178 + $0x79] sm:$0xff]
        %v979 = vld [vmem:[%s178 + $0x81] sm:$0xff]
        %v980 = vld [vmem:[%s178 + $0x91] sm:$0xff]
        %v981 = vld [vmem:[%s178 + $0x99] sm:$0xff]
        %v982 = vld [vmem:[%s178 + $0xa9] sm:$0xff]
        %v983 = vld [vmem:[%s178 + $0xb1] sm:$0xff]
        %v984 = vld [vmem:[%s178 + $0xc1] sm:$0xff]
        %v985 = vld [vmem:[%s178 + $0xc9] sm:$0xff]
        %v986 = vld [vmem:[%s178 + $0xd9] sm:$0xff]
        %v987 = vld [vmem:[%s178 + $0xe1] sm:$0xff]
        %v988 = vld [vmem:[%s178 + $0xf1] sm:$0xff]
        %v989 = vld [vmem:[%s178 + $0xf9] sm:$0xff]
        %v990 = vld [vmem:[%s178 + $0x109] sm:$0xff]
        %v991 = vld [vmem:[%s178 + $0x111] sm:$0xff]
        %v992 = vld [vmem:[%s178 + $0x121] sm:$0xff]
        %v993 = vld [vmem:[%s178 + $0x129] sm:$0xff]
        %v994 = vld [vmem:[%s178 + $0x139] sm:$0xff]
        %v995 = vld [vmem:[%s178 + $0x141] sm:$0xff]
        %v996 = vld [vmem:[%s178 + $0x151] sm:$0xff]
        %v997 = vld [vmem:[%s178 + $0x159] sm:$0xff]
        %v998 = vld [vmem:[%s178 + $0x169] sm:$0xff]
        %v999 = vld [vmem:[%s178 + $0x171] sm:$0xff]
        %1000 = vrot.lane.b32.xlu0 %v308, 112
        %v1001 = vpop.permute.xlu0 %1000
        %v1002 = vsel %vm169, %v1001, 0
        %v1005 = vsel %vm169, %v968, 0
        %v1008 = vsel %vm169, %v969, 0
        %v1011 = vsel %vm169, %v970, 0
        %v1014 = vsel %vm169, %v971, 0
        %v1017 = vsel %vm169, %v972, 0
        %v1020 = vsel %vm169, %v973, 0
        %v1023 = vsel %vm169, %v974, 0
        %v1026 = vsel %vm169, %v975, 0
        %v1029 = vsel %vm169, %v976, 0
        %v1032 = vsel %vm169, %v977, 0
        %v1035 = vsel %vm169, %v978, 0
        %v1038 = vsel %vm169, %v979, 0
        %v1041 = vsel %vm169, %v980, 0
        %v1044 = vsel %vm169, %v981, 0
        %v1047 = vsel %vm169, %v982, 0
        %v1050 = vsel %vm169, %v983, 0
        %v1053 = vsel %vm169, %v984, 0
        %v1056 = vsel %vm169, %v985, 0
        %v1059 = vsel %vm169, %v986, 0
        %v1062 = vsel %vm169, %v987, 0
        %v1065 = vsel %vm169, %v988, 0
        %v1068 = vsel %vm169, %v989, 0
        %v1071 = vsel %vm169, %v990, 0
        %v1074 = vsel %vm169, %v991, 0
        %v1077 = vsel %vm169, %v992, 0
        %v1080 = vsel %vm169, %v993, 0
        %v1083 = vsel %vm169, %v994, 0
        %v1086 = vsel %vm169, %v995, 0
        %v1089 = vsel %vm169, %v996, 0
        %v1092 = vsel %vm169, %v997, 0
        %v1095 = vsel %vm169, %v998, 0
        %v1098 = vsel %vm169, %v999, 0
        %1100 = vmatpush.xpose.msra.mxu0 %v1050
        %1101 = vmatpush.xpose.msra.mxu0 %v1047
        %1102 = vmatpush.xpose.msra.mxu0 %v1044
        %1103 = vmatpush.xpose.msra.mxu0 %v1041
        %1104 = vmatpush.xpose.msra.mxu0 %v1038
        %1105 = vmatpush.xpose.msra.mxu0 %v1035
        %1106 = vmatpush.xpose.msra.mxu0 %v1032
        %1107 = vmatpush.xpose.msra.mxu0 %v1029
        %1108 = vmatpush.xpose.msra.mxu0 %v1026
        %1109 = vmatpush.xpose.msra.mxu0 %v1023
        %1110 = vmatpush.xpose.msra.mxu0 %v1020
        %1111 = vmatpush.xpose.msra.mxu0 %v1017
        %1112 = vmatpush.xpose.msra.mxu0 %v1014
        %1113 = vmatpush.xpose.msra.mxu0 %v1011
        %1114 = vmatpush.xpose.msra.mxu0 %v1008
        %1115 = vmatpush.xpose.msra.mxu0 %v1005
        %1116 = vmatmul.f32.gmra.mxu0 %v1002
        %v1117 = vpop.f32.mrf.mxu0
        %v1118 = vadd.f32 0.0, %v1117
        %1119 = vdwg.mxu0
        %1120 = vmatpush.xpose.msra.mxu0 %v1098
        %1121 = vmatpush.xpose.msra.mxu0 %v1095
        %1122 = vmatpush.xpose.msra.mxu0 %v1092
        %1123 = vmatpush.xpose.msra.mxu0 %v1089
        %1124 = vmatpush.xpose.msra.mxu0 %v1086
        %1125 = vmatpush.xpose.msra.mxu0 %v1083
        %1126 = vmatpush.xpose.msra.mxu0 %v1080
        %1127 = vmatpush.xpose.msra.mxu0 %v1077
        %1128 = vmatpush.xpose.msra.mxu0 %v1074
        %1129 = vmatpush.xpose.msra.mxu0 %v1071
        %1130 = vmatpush.xpose.msra.mxu0 %v1068
        %1131 = vmatpush.xpose.msra.mxu0 %v1065
        %1132 = vmatpush.xpose.msra.mxu0 %v1062
        %1133 = vmatpush.xpose.msra.mxu0 %v1059
        %1134 = vmatpush.xpose.msra.mxu0 %v1056
        %1135 = vmatpush.xpose.msra.mxu0 %v1053
        %1136 = vmatmul.f32.gmra.mxu0 %v1002
        %v1137 = vpop.f32.mrf.mxu0
        %v1138 = vadd.f32 0.0, %v1137
        %1139 = vdwg.mxu0
        %v1140 = vadd.f32 %v966, %v1118
        %v1141 = vadd.f32 %v967, %v1138
        %v1142 = vld [vmem:[%s178 + $0x2] sm:$0xff]
        %v1143 = vld [vmem:[%s178 + $0xa] sm:$0xff]
        %v1144 = vld [vmem:[%s178 + $0x1a] sm:$0xff]
        %v1145 = vld [vmem:[%s178 + $0x22] sm:$0xff]
        %v1146 = vld [vmem:[%s178 + $0x32] sm:$0xff]
        %v1147 = vld [vmem:[%s178 + $0x3a] sm:$0xff]
        %v1148 = vld [vmem:[%s178 + $0x4a] sm:$0xff]
        %v1149 = vld [vmem:[%s178 + $0x52] sm:$0xff]
        %v1150 = vld [vmem:[%s178 + $0x62] sm:$0xff]
        %v1151 = vld [vmem:[%s178 + $0x6a] sm:$0xff]
        %v1152 = vld [vmem:[%s178 + $0x7a] sm:$0xff]
        %v1153 = vld [vmem:[%s178 + $0x82] sm:$0xff]
        %v1154 = vld [vmem:[%s178 + $0x92] sm:$0xff]
        %v1155 = vld [vmem:[%s178 + $0x9a] sm:$0xff]
        %v1156 = vld [vmem:[%s178 + $0xaa] sm:$0xff]
        %v1157 = vld [vmem:[%s178 + $0xb2] sm:$0xff]
        %v1158 = vld [vmem:[%s178 + $0xc2] sm:$0xff]
        %v1159 = vld [vmem:[%s178 + $0xca] sm:$0xff]
        %v1160 = vld [vmem:[%s178 + $0xda] sm:$0xff]
        %v1161 = vld [vmem:[%s178 + $0xe2] sm:$0xff]
        %v1162 = vld [vmem:[%s178 + $0xf2] sm:$0xff]
        %v1163 = vld [vmem:[%s178 + $0xfa] sm:$0xff]
        %v1164 = vld [vmem:[%s178 + $0x10a] sm:$0xff]
        %v1165 = vld [vmem:[%s178 + $0x112] sm:$0xff]
        %v1166 = vld [vmem:[%s178 + $0x122] sm:$0xff]
        %v1167 = vld [vmem:[%s178 + $0x12a] sm:$0xff]
        %v1168 = vld [vmem:[%s178 + $0x13a] sm:$0xff]
        %v1169 = vld [vmem:[%s178 + $0x142] sm:$0xff]
        %v1170 = vld [vmem:[%s178 + $0x152] sm:$0xff]
        %v1171 = vld [vmem:[%s178 + $0x15a] sm:$0xff]
        %v1172 = vld [vmem:[%s178 + $0x16a] sm:$0xff]
        %v1173 = vld [vmem:[%s178 + $0x172] sm:$0xff]
        %1174 = vrot.lane.b32.xlu0 %v308, 108
        %v1175 = vpop.permute.xlu0 %1174
        %v1176 = vsel %vm169, %v1175, 0
        %v1179 = vsel %vm169, %v1142, 0
        %v1182 = vsel %vm169, %v1143, 0
        %v1185 = vsel %vm169, %v1144, 0
        %v1188 = vsel %vm169, %v1145, 0
        %v1191 = vsel %vm169, %v1146, 0
        %v1194 = vsel %vm169, %v1147, 0
        %v1197 = vsel %vm169, %v1148, 0
        %v1200 = vsel %vm169, %v1149, 0
        %v1203 = vsel %vm169, %v1150, 0
        %v1206 = vsel %vm169, %v1151, 0
        %v1209 = vsel %vm169, %v1152, 0
        %v1212 = vsel %vm169, %v1153, 0
        %v1215 = vsel %vm169, %v1154, 0
        %v1218 = vsel %vm169, %v1155, 0
        %v1221 = vsel %vm169, %v1156, 0
        %v1224 = vsel %vm169, %v1157, 0
        %v1227 = vsel %vm169, %v1158, 0
        %v1230 = vsel %vm169, %v1159, 0
        %v1233 = vsel %vm169, %v1160, 0
        %v1236 = vsel %vm169, %v1161, 0
        %v1239 = vsel %vm169, %v1162, 0
        %v1242 = vsel %vm169, %v1163, 0
        %v1245 = vsel %vm169, %v1164, 0
        %v1248 = vsel %vm169, %v1165, 0
        %v1251 = vsel %vm169, %v1166, 0
        %v1254 = vsel %vm169, %v1167, 0
        %v1257 = vsel %vm169, %v1168, 0
        %v1260 = vsel %vm169, %v1169, 0
        %v1263 = vsel %vm169, %v1170, 0
        %v1266 = vsel %vm169, %v1171, 0
        %v1269 = vsel %vm169, %v1172, 0
        %v1272 = vsel %vm169, %v1173, 0
        %1274 = vmatpush.xpose.msra.mxu0 %v1224
        %1275 = vmatpush.xpose.msra.mxu0 %v1221
        %1276 = vmatpush.xpose.msra.mxu0 %v1218
        %1277 = vmatpush.xpose.msra.mxu0 %v1215
        %1278 = vmatpush.xpose.msra.mxu0 %v1212
        %1279 = vmatpush.xpose.msra.mxu0 %v1209
        %1280 = vmatpush.xpose.msra.mxu0 %v1206
        %1281 = vmatpush.xpose.msra.mxu0 %v1203
        %1282 = vmatpush.xpose.msra.mxu0 %v1200
        %1283 = vmatpush.xpose.msra.mxu0 %v1197
        %1284 = vmatpush.xpose.msra.mxu0 %v1194
        %1285 = vmatpush.xpose.msra.mxu0 %v1191
        %1286 = vmatpush.xpose.msra.mxu0 %v1188
        %1287 = vmatpush.xpose.msra.mxu0 %v1185
        %1288 = vmatpush.xpose.msra.mxu0 %v1182
        %1289 = vmatpush.xpose.msra.mxu0 %v1179
        %1290 = vmatmul.f32.gmra.mxu0 %v1176
        %v1291 = vpop.f32.mrf.mxu0
        %v1292 = vadd.f32 0.0, %v1291
        %1293 = vdwg.mxu0
        %1294 = vmatpush.xpose.msra.mxu0 %v1272
        %1295 = vmatpush.xpose.msra.mxu0 %v1269
        %1296 = vmatpush.xpose.msra.mxu0 %v1266
        %1297 = vmatpush.xpose.msra.mxu0 %v1263
        %1298 = vmatpush.xpose.msra.mxu0 %v1260
        %1299 = vmatpush.xpose.msra.mxu0 %v1257
        %1300 = vmatpush.xpose.msra.mxu0 %v1254
        %1301 = vmatpush.xpose.msra.mxu0 %v1251
        %1302 = vmatpush.xpose.msra.mxu0 %v1248
        %1303 = vmatpush.xpose.msra.mxu0 %v1245
        %1304 = vmatpush.xpose.msra.mxu0 %v1242
        %1305 = vmatpush.xpose.msra.mxu0 %v1239
        %1306 = vmatpush.xpose.msra.mxu0 %v1236
        %1307 = vmatpush.xpose.msra.mxu0 %v1233
        %1308 = vmatpush.xpose.msra.mxu0 %v1230
        %1309 = vmatpush.xpose.msra.mxu0 %v1227
        %1310 = vmatmul.f32.gmra.mxu0 %v1176
        %v1311 = vpop.f32.mrf.mxu0
        %v1312 = vadd.f32 0.0, %v1311
        %1313 = vdwg.mxu0
        %v1314 = vadd.f32 %v1140, %v1292
        %v1315 = vadd.f32 %v1141, %v1312
        %s1316 = scalar_lea.vmem [#allocation2], 48
        %v1317 = vld [vmem:[%s1316] sm:$0xff]
        %v1318 = vld [vmem:[%s1316 + $0x8] sm:$0xff]
        %v1319 = vld [vmem:[%s1316 + $0x18] sm:$0xff]
        %v1320 = vld [vmem:[%s1316 + $0x20] sm:$0xff]
        %v1321 = vld [vmem:[%s1316 + $0x30] sm:$0xff]
        %v1322 = vld [vmem:[%s1316 + $0x38] sm:$0xff]
        %v1323 = vld [vmem:[%s1316 + $0x48] sm:$0xff]
        %v1324 = vld [vmem:[%s1316 + $0x50] sm:$0xff]
        %v1325 = vld [vmem:[%s1316 + $0x60] sm:$0xff]
        %v1326 = vld [vmem:[%s1316 + $0x68] sm:$0xff]
        %v1327 = vld [vmem:[%s1316 + $0x78] sm:$0xff]
        %v1328 = vld [vmem:[%s1316 + $0x80] sm:$0xff]
        %v1329 = vld [vmem:[%s1316 + $0x90] sm:$0xff]
        %v1330 = vld [vmem:[%s1316 + $0x98] sm:$0xff]
        %v1331 = vld [vmem:[%s1316 + $0xa8] sm:$0xff]
        %v1332 = vld [vmem:[%s1316 + $0xb0] sm:$0xff]
        %v1333 = vld [vmem:[%s1316 + $0xc0] sm:$0xff]
        %v1334 = vld [vmem:[%s1316 + $0xc8] sm:$0xff]
        %v1335 = vld [vmem:[%s1316 + $0xd8] sm:$0xff]
        %v1336 = vld [vmem:[%s1316 + $0xe0] sm:$0xff]
        %v1337 = vld [vmem:[%s1316 + $0xf0] sm:$0xff]
        %v1338 = vld [vmem:[%s1316 + $0xf8] sm:$0xff]
        %v1339 = vld [vmem:[%s1316 + $0x108] sm:$0xff]
        %v1340 = vld [vmem:[%s1316 + $0x110] sm:$0xff]
        %v1341 = vld [vmem:[%s1316 + $0x120] sm:$0xff]
        %v1342 = vld [vmem:[%s1316 + $0x128] sm:$0xff]
        %v1343 = vld [vmem:[%s1316 + $0x138] sm:$0xff]
        %v1344 = vld [vmem:[%s1316 + $0x140] sm:$0xff]
        %v1345 = vld [vmem:[%s1316 + $0x150] sm:$0xff]
        %v1346 = vld [vmem:[%s1316 + $0x158] sm:$0xff]
        %v1347 = vld [vmem:[%s1316 + $0x168] sm:$0xff]
        %v1348 = vld [vmem:[%s1316 + $0x170] sm:$0xff]
        %1349 = vrot.lane.b32.xlu0 %v308, 104
        %v1350 = vpop.permute.xlu0 %1349
        %v1351 = vsel %vm169, %v1350, 0
        %v1354 = vsel %vm169, %v1317, 0
        %v1357 = vsel %vm169, %v1318, 0
        %v1360 = vsel %vm169, %v1319, 0
        %v1363 = vsel %vm169, %v1320, 0
        %v1366 = vsel %vm169, %v1321, 0
        %v1369 = vsel %vm169, %v1322, 0
        %v1372 = vsel %vm169, %v1323, 0
        %v1375 = vsel %vm169, %v1324, 0
        %v1378 = vsel %vm169, %v1325, 0
        %v1381 = vsel %vm169, %v1326, 0
        %v1384 = vsel %vm169, %v1327, 0
        %v1387 = vsel %vm169, %v1328, 0
        %v1390 = vsel %vm169, %v1329, 0
        %v1393 = vsel %vm169, %v1330, 0
        %v1396 = vsel %vm169, %v1331, 0
        %v1399 = vsel %vm169, %v1332, 0
        %v1402 = vsel %vm169, %v1333, 0
        %v1405 = vsel %vm169, %v1334, 0
        %v1408 = vsel %vm169, %v1335, 0
        %v1411 = vsel %vm169, %v1336, 0
        %v1414 = vsel %vm169, %v1337, 0
        %v1417 = vsel %vm169, %v1338, 0
        %v1420 = vsel %vm169, %v1339, 0
        %v1423 = vsel %vm169, %v1340, 0
        %v1426 = vsel %vm169, %v1341, 0
        %v1429 = vsel %vm169, %v1342, 0
        %v1432 = vsel %vm169, %v1343, 0
        %v1435 = vsel %vm169, %v1344, 0
        %v1438 = vsel %vm169, %v1345, 0
        %v1441 = vsel %vm169, %v1346, 0
        %v1444 = vsel %vm169, %v1347, 0
        %v1447 = vsel %vm169, %v1348, 0
        %1449 = vmatpush.xpose.msra.mxu0 %v1399
        %1450 = vmatpush.xpose.msra.mxu0 %v1396
        %1451 = vmatpush.xpose.msra.mxu0 %v1393
        %1452 = vmatpush.xpose.msra.mxu0 %v1390
        %1453 = vmatpush.xpose.msra.mxu0 %v1387
        %1454 = vmatpush.xpose.msra.mxu0 %v1384
        %1455 = vmatpush.xpose.msra.mxu0 %v1381
        %1456 = vmatpush.xpose.msra.mxu0 %v1378
        %1457 = vmatpush.xpose.msra.mxu0 %v1375
        %1458 = vmatpush.xpose.msra.mxu0 %v1372
        %1459 = vmatpush.xpose.msra.mxu0 %v1369
        %1460 = vmatpush.xpose.msra.mxu0 %v1366
        %1461 = vmatpush.xpose.msra.mxu0 %v1363
        %1462 = vmatpush.xpose.msra.mxu0 %v1360
        %1463 = vmatpush.xpose.msra.mxu0 %v1357
        %1464 = vmatpush.xpose.msra.mxu0 %v1354
        %1465 = vmatmul.f32.gmra.mxu0 %v1351
        %v1466 = vpop.f32.mrf.mxu0
        %v1467 = vadd.f32 0.0, %v1466
        %1468 = vdwg.mxu0
        %1469 = vmatpush.xpose.msra.mxu0 %v1447
        %1470 = vmatpush.xpose.msra.mxu0 %v1444
        %1471 = vmatpush.xpose.msra.mxu0 %v1441
        %1472 = vmatpush.xpose.msra.mxu0 %v1438
        %1473 = vmatpush.xpose.msra.mxu0 %v1435
        %1474 = vmatpush.xpose.msra.mxu0 %v1432
        %1475 = vmatpush.xpose.msra.mxu0 %v1429
        %1476 = vmatpush.xpose.msra.mxu0 %v1426
        %1477 = vmatpush.xpose.msra.mxu0 %v1423
        %1478 = vmatpush.xpose.msra.mxu0 %v1420
        %1479 = vmatpush.xpose.msra.mxu0 %v1417
        %1480 = vmatpush.xpose.msra.mxu0 %v1414
        %1481 = vmatpush.xpose.msra.mxu0 %v1411
        %1482 = vmatpush.xpose.msra.mxu0 %v1408
        %1483 = vmatpush.xpose.msra.mxu0 %v1405
        %1484 = vmatpush.xpose.msra.mxu0 %v1402
        %1485 = vmatmul.f32.gmra.mxu0 %v1351
        %v1486 = vpop.f32.mrf.mxu0
        %v1487 = vadd.f32 0.0, %v1486
        %1488 = vdwg.mxu0
        %v1489 = vadd.f32 %v1314, %v1467
        %v1490 = vadd.f32 %v1315, %v1487
        %v1491 = vld [vmem:[%s1316 + $0x1] sm:$0xff]
        %v1492 = vld [vmem:[%s1316 + $0x9] sm:$0xff]
        %v1493 = vld [vmem:[%s1316 + $0x19] sm:$0xff]
        %v1494 = vld [vmem:[%s1316 + $0x21] sm:$0xff]
        %v1495 = vld [vmem:[%s1316 + $0x31] sm:$0xff]
        %v1496 = vld [vmem:[%s1316 + $0x39] sm:$0xff]
        %v1497 = vld [vmem:[%s1316 + $0x49] sm:$0xff]
        %v1498 = vld [vmem:[%s1316 + $0x51] sm:$0xff]
        %v1499 = vld [vmem:[%s1316 + $0x61] sm:$0xff]
        %v1500 = vld [vmem:[%s1316 + $0x69] sm:$0xff]
        %v1501 = vld [vmem:[%s1316 + $0x79] sm:$0xff]
        %v1502 = vld [vmem:[%s1316 + $0x81] sm:$0xff]
        %v1503 = vld [vmem:[%s1316 + $0x91] sm:$0xff]
        %v1504 = vld [vmem:[%s1316 + $0x99] sm:$0xff]
        %v1505 = vld [vmem:[%s1316 + $0xa9] sm:$0xff]
        %v1506 = vld [vmem:[%s1316 + $0xb1] sm:$0xff]
        %v1507 = vld [vmem:[%s1316 + $0xc1] sm:$0xff]
        %v1508 = vld [vmem:[%s1316 + $0xc9] sm:$0xff]
        %v1509 = vld [vmem:[%s1316 + $0xd9] sm:$0xff]
        %v1510 = vld [vmem:[%s1316 + $0xe1] sm:$0xff]
        %v1511 = vld [vmem:[%s1316 + $0xf1] sm:$0xff]
        %v1512 = vld [vmem:[%s1316 + $0xf9] sm:$0xff]
        %v1513 = vld [vmem:[%s1316 + $0x109] sm:$0xff]
        %v1514 = vld [vmem:[%s1316 + $0x111] sm:$0xff]
        %v1515 = vld [vmem:[%s1316 + $0x121] sm:$0xff]
        %v1516 = vld [vmem:[%s1316 + $0x129] sm:$0xff]
        %v1517 = vld [vmem:[%s1316 + $0x139] sm:$0xff]
        %v1518 = vld [vmem:[%s1316 + $0x141] sm:$0xff]
        %v1519 = vld [vmem:[%s1316 + $0x151] sm:$0xff]
        %v1520 = vld [vmem:[%s1316 + $0x159] sm:$0xff]
        %v1521 = vld [vmem:[%s1316 + $0x169] sm:$0xff]
        %v1522 = vld [vmem:[%s1316 + $0x171] sm:$0xff]
        %1523 = vrot.lane.b32.xlu0 %v308, 100
        %v1524 = vpop.permute.xlu0 %1523
        %v1525 = vsel %vm169, %v1524, 0
        %v1528 = vsel %vm169, %v1491, 0
        %v1531 = vsel %vm169, %v1492, 0
        %v1534 = vsel %vm169, %v1493, 0
        %v1537 = vsel %vm169, %v1494, 0
        %v1540 = vsel %vm169, %v1495, 0
        %v1543 = vsel %vm169, %v1496, 0
        %v1546 = vsel %vm169, %v1497, 0
        %v1549 = vsel %vm169, %v1498, 0
        %v1552 = vsel %vm169, %v1499, 0
        %v1555 = vsel %vm169, %v1500, 0
        %v1558 = vsel %vm169, %v1501, 0
        %v1561 = vsel %vm169, %v1502, 0
        %v1564 = vsel %vm169, %v1503, 0
        %v1567 = vsel %vm169, %v1504, 0
        %v1570 = vsel %vm169, %v1505, 0
        %v1573 = vsel %vm169, %v1506, 0
        %v1576 = vsel %vm169, %v1507, 0
        %v1579 = vsel %vm169, %v1508, 0
        %v1582 = vsel %vm169, %v1509, 0
        %v1585 = vsel %vm169, %v1510, 0
        %v1588 = vsel %vm169, %v1511, 0
        %v1591 = vsel %vm169, %v1512, 0
        %v1594 = vsel %vm169, %v1513, 0
        %v1597 = vsel %vm169, %v1514, 0
        %v1600 = vsel %vm169, %v1515, 0
        %v1603 = vsel %vm169, %v1516, 0
        %v1606 = vsel %vm169, %v1517, 0
        %v1609 = vsel %vm169, %v1518, 0
        %v1612 = vsel %vm169, %v1519, 0
        %v1615 = vsel %vm169, %v1520, 0
        %v1618 = vsel %vm169, %v1521, 0
        %v1621 = vsel %vm169, %v1522, 0
        %1623 = vmatpush.xpose.msra.mxu0 %v1573
        %1624 = vmatpush.xpose.msra.mxu0 %v1570
        %1625 = vmatpush.xpose.msra.mxu0 %v1567
        %1626 = vmatpush.xpose.msra.mxu0 %v1564
        %1627 = vmatpush.xpose.msra.mxu0 %v1561
        %1628 = vmatpush.xpose.msra.mxu0 %v1558
        %1629 = vmatpush.xpose.msra.mxu0 %v1555
        %1630 = vmatpush.xpose.msra.mxu0 %v1552
        %1631 = vmatpush.xpose.msra.mxu0 %v1549
        %1632 = vmatpush.xpose.msra.mxu0 %v1546
        %1633 = vmatpush.xpose.msra.mxu0 %v1543
        %1634 = vmatpush.xpose.msra.mxu0 %v1540
        %1635 = vmatpush.xpose.msra.mxu0 %v1537
        %1636 = vmatpush.xpose.msra.mxu0 %v1534
        %1637 = vmatpush.xpose.msra.mxu0 %v1531
        %1638 = vmatpush.xpose.msra.mxu0 %v1528
        %1639 = vmatmul.f32.gmra.mxu0 %v1525
        %v1640 = vpop.f32.mrf.mxu0
        %v1641 = vadd.f32 0.0, %v1640
        %1642 = vdwg.mxu0
        %1643 = vmatpush.xpose.msra.mxu0 %v1621
        %1644 = vmatpush.xpose.msra.mxu0 %v1618
        %1645 = vmatpush.xpose.msra.mxu0 %v1615
        %1646 = vmatpush.xpose.msra.mxu0 %v1612
        %1647 = vmatpush.xpose.msra.mxu0 %v1609
        %1648 = vmatpush.xpose.msra.mxu0 %v1606
        %1649 = vmatpush.xpose.msra.mxu0 %v1603
        %1650 = vmatpush.xpose.msra.mxu0 %v1600
        %1651 = vmatpush.xpose.msra.mxu0 %v1597
        %1652 = vmatpush.xpose.msra.mxu0 %v1594
        %1653 = vmatpush.xpose.msra.mxu0 %v1591
        %1654 = vmatpush.xpose.msra.mxu0 %v1588
        %1655 = vmatpush.xpose.msra.mxu0 %v1585
        %1656 = vmatpush.xpose.msra.mxu0 %v1582
        %1657 = vmatpush.xpose.msra.mxu0 %v1579
        %1658 = vmatpush.xpose.msra.mxu0 %v1576
        %1659 = vmatmul.f32.gmra.mxu0 %v1525
        %v1660 = vpop.f32.mrf.mxu0
        %v1661 = vadd.f32 0.0, %v1660
        %1662 = vdwg.mxu0
        %v1663 = vadd.f32 %v1489, %v1641
        %v1664 = vadd.f32 %v1490, %v1661
        %v1665 = vld [vmem:[%s1316 + $0x2] sm:$0xff]
        %v1666 = vld [vmem:[%s1316 + $0xa] sm:$0xff]
        %v1667 = vld [vmem:[%s1316 + $0x1a] sm:$0xff]
        %v1668 = vld [vmem:[%s1316 + $0x22] sm:$0xff]
        %v1669 = vld [vmem:[%s1316 + $0x32] sm:$0xff]
        %v1670 = vld [vmem:[%s1316 + $0x3a] sm:$0xff]
        %v1671 = vld [vmem:[%s1316 + $0x4a] sm:$0xff]
        %v1672 = vld [vmem:[%s1316 + $0x52] sm:$0xff]
        %v1673 = vld [vmem:[%s1316 + $0x62] sm:$0xff]
        %v1674 = vld [vmem:[%s1316 + $0x6a] sm:$0xff]
        %v1675 = vld [vmem:[%s1316 + $0x7a] sm:$0xff]
        %v1676 = vld [vmem:[%s1316 + $0x82] sm:$0xff]
        %v1677 = vld [vmem:[%s1316 + $0x92] sm:$0xff]
        %v1678 = vld [vmem:[%s1316 + $0x9a] sm:$0xff]
        %v1679 = vld [vmem:[%s1316 + $0xaa] sm:$0xff]
        %v1680 = vld [vmem:[%s1316 + $0xb2] sm:$0xff]
        %v1681 = vld [vmem:[%s1316 + $0xc2] sm:$0xff]
        %v1682 = vld [vmem:[%s1316 + $0xca] sm:$0xff]
        %v1683 = vld [vmem:[%s1316 + $0xda] sm:$0xff]
        %v1684 = vld [vmem:[%s1316 + $0xe2] sm:$0xff]
        %v1685 = vld [vmem:[%s1316 + $0xf2] sm:$0xff]
        %v1686 = vld [vmem:[%s1316 + $0xfa] sm:$0xff]
        %v1687 = vld [vmem:[%s1316 + $0x10a] sm:$0xff]
        %v1688 = vld [vmem:[%s1316 + $0x112] sm:$0xff]
        %v1689 = vld [vmem:[%s1316 + $0x122] sm:$0xff]
        %v1690 = vld [vmem:[%s1316 + $0x12a] sm:$0xff]
        %v1691 = vld [vmem:[%s1316 + $0x13a] sm:$0xff]
        %v1692 = vld [vmem:[%s1316 + $0x142] sm:$0xff]
        %v1693 = vld [vmem:[%s1316 + $0x152] sm:$0xff]
        %v1694 = vld [vmem:[%s1316 + $0x15a] sm:$0xff]
        %v1695 = vld [vmem:[%s1316 + $0x16a] sm:$0xff]
        %v1696 = vld [vmem:[%s1316 + $0x172] sm:$0xff]
        %1697 = vrot.lane.b32.xlu0 %v308, 96
        %v1698 = vpop.permute.xlu0 %1697
        %v1699 = vsel %vm169, %v1698, 0
        %v1702 = vsel %vm169, %v1665, 0
        %v1705 = vsel %vm169, %v1666, 0
        %v1708 = vsel %vm169, %v1667, 0
        %v1711 = vsel %vm169, %v1668, 0
        %v1714 = vsel %vm169, %v1669, 0
        %v1717 = vsel %vm169, %v1670, 0
        %v1720 = vsel %vm169, %v1671, 0
        %v1723 = vsel %vm169, %v1672, 0
        %v1726 = vsel %vm169, %v1673, 0
        %v1729 = vsel %vm169, %v1674, 0
        %v1732 = vsel %vm169, %v1675, 0
        %v1735 = vsel %vm169, %v1676, 0
        %v1738 = vsel %vm169, %v1677, 0
        %v1741 = vsel %vm169, %v1678, 0
        %v1744 = vsel %vm169, %v1679, 0
        %v1747 = vsel %vm169, %v1680, 0
        %v1750 = vsel %vm169, %v1681, 0
        %v1753 = vsel %vm169, %v1682, 0
        %v1756 = vsel %vm169, %v1683, 0
        %v1759 = vsel %vm169, %v1684, 0
        %v1762 = vsel %vm169, %v1685, 0
        %v1765 = vsel %vm169, %v1686, 0
        %v1768 = vsel %vm169, %v1687, 0
        %v1771 = vsel %vm169, %v1688, 0
        %v1774 = vsel %vm169, %v1689, 0
        %v1777 = vsel %vm169, %v1690, 0
        %v1780 = vsel %vm169, %v1691, 0
        %v1783 = vsel %vm169, %v1692, 0
        %v1786 = vsel %vm169, %v1693, 0
        %v1789 = vsel %vm169, %v1694, 0
        %v1792 = vsel %vm169, %v1695, 0
        %v1795 = vsel %vm169, %v1696, 0
        %1797 = vmatpush.xpose.msra.mxu0 %v1747
        %1798 = vmatpush.xpose.msra.mxu0 %v1744
        %1799 = vmatpush.xpose.msra.mxu0 %v1741
        %1800 = vmatpush.xpose.msra.mxu0 %v1738
        %1801 = vmatpush.xpose.msra.mxu0 %v1735
        %1802 = vmatpush.xpose.msra.mxu0 %v1732
        %1803 = vmatpush.xpose.msra.mxu0 %v1729
        %1804 = vmatpush.xpose.msra.mxu0 %v1726
        %1805 = vmatpush.xpose.msra.mxu0 %v1723
        %1806 = vmatpush.xpose.msra.mxu0 %v1720
        %1807 = vmatpush.xpose.msra.mxu0 %v1717
        %1808 = vmatpush.xpose.msra.mxu0 %v1714
        %1809 = vmatpush.xpose.msra.mxu0 %v1711
        %1810 = vmatpush.xpose.msra.mxu0 %v1708
        %1811 = vmatpush.xpose.msra.mxu0 %v1705
        %1812 = vmatpush.xpose.msra.mxu0 %v1702
        %1813 = vmatmul.f32.gmra.mxu0 %v1699
        %v1814 = vpop.f32.mrf.mxu0
        %v1815 = vadd.f32 0.0, %v1814
        %1816 = vdwg.mxu0
        %1817 = vmatpush.xpose.msra.mxu0 %v1795
        %1818 = vmatpush.xpose.msra.mxu0 %v1792
        %1819 = vmatpush.xpose.msra.mxu0 %v1789
        %1820 = vmatpush.xpose.msra.mxu0 %v1786
        %1821 = vmatpush.xpose.msra.mxu0 %v1783
        %1822 = vmatpush.xpose.msra.mxu0 %v1780
        %1823 = vmatpush.xpose.msra.mxu0 %v1777
        %1824 = vmatpush.xpose.msra.mxu0 %v1774
        %1825 = vmatpush.xpose.msra.mxu0 %v1771
        %1826 = vmatpush.xpose.msra.mxu0 %v1768
        %1827 = vmatpush.xpose.msra.mxu0 %v1765
        %1828 = vmatpush.xpose.msra.mxu0 %v1762
        %1829 = vmatpush.xpose.msra.mxu0 %v1759
        %1830 = vmatpush.xpose.msra.mxu0 %v1756
        %1831 = vmatpush.xpose.msra.mxu0 %v1753
        %1832 = vmatpush.xpose.msra.mxu0 %v1750
        %1833 = vmatmul.f32.gmra.mxu0 %v1699
        %v1834 = vpop.f32.mrf.mxu0
        %v1835 = vadd.f32 0.0, %v1834
        %1836 = vdwg.mxu0
        %v1837 = vadd.f32 %v1663, %v1815
        %v1838 = vadd.f32 %v1664, %v1835
        %v1839 = vld [vmem:[%s2] sm:$0xff]
        %1841 = vset.pattern.permute.xlu0 0
        %1842 = vperm.xlu0 %1841, %v1839
        %v1843 = vpop.permute.xlu0 %1842
        %v1845 = vadd.f32 %v1837, %v1843
        %v1846 = vadd.f32 %v1838, %v1843
        %v1847 = vmax.f32 %v1845, 0.0
        %v1848 = vmax.f32 %v1846, 0.0
        %1849 = vst [vmem:[%s163] sm:$0xff] %v1847
        %1850 = vst [vmem:[%s163 + $0x8] sm:$0xff] %v1848
        %s1851 = sand.u32 %s93, 1
        %s1852 = scalar_lea.sflag [#allocation4], %s1851
        %s1853 = sand.u32 %s93, 1
        %s1854 = smul.addr %s1853, 16
        %s1855 = scalar_lea.vmem [#allocation3], %s1854
        // Predicated region
        $region33: #{tpu_custom_call.1} parent=31 // pred_check
          %p1856 = pneg %p103
        $region34: #{tpu_custom_call.1} parent=31 // pred_check_branch
          %1858 = sbr.rel (%p1856) target = $region36
        $region35: #{tpu_custom_call.1} parent=31 // pred_region
          %1860 = vsyncadd %s1852, 0
          %s1861 = smul.addr %s17, 2
          %s1862 = smul.addr %s1861, 8
          %s1863 = scalar_lea.hbm %s3, %s1862
          %s1865 = sshll.u32 %s1855, 4
          %s1866 = int_to_ptr.vmem [resolvable:$true] %s1865
          %s1867 = sshll.u32 %s1863, 4
          %s1868 = int_to_ptr.hbm [resolvable:$true] %s1867
          %1870 = dma.vmem_to_hbm [thread:$0]  %s1866, 256, %s1868, %s1852
        $region36: #{tpu_custom_call.1} parent=31 // pred_fallthru
          _
      $region32: #{tpu_custom_call.1} parent=5 // pred_fallthru
        _
      %p1871 = scmp.le.s32.totalorder 2, %s12
      // Predicated region
      $region37: #{tpu_custom_call.1} parent=5 // pred_check
        %p1872 = pneg %p1871
      $region38: #{tpu_custom_call.1} parent=5 // pred_check_branch
        %1874 = sbr.rel (%p1872) target = $region40
      $region39: #{tpu_custom_call.1} parent=5 // pred_region
        %s1875 = ssub.s32 %s12, 2
        // Predicated region
        $region41: #{tpu_custom_call.1} parent=39 // pred_check
          %p1876 = pneg %p109
        $region42: #{tpu_custom_call.1} parent=39 // pred_check_branch
          %1878 = sbr.rel (%p1876) target = $region44
        $region43: #{tpu_custom_call.1} parent=39 // pred_region
          %s1879 = sand.u32 %s94, 1
          %s1880 = scalar_lea.sflag [#allocation4], %s1879
          %s1881 = sand.u32 %s94, 1
          %s1882 = smul.addr %s1881, 16
          %s1883 = scalar_lea.vmem [#allocation3], %s1882
          %1885 = dma.done %s1880, 256
        $region44: #{tpu_custom_call.1} parent=39 // pred_fallthru
          _
      $region40: #{tpu_custom_call.1} parent=5 // pred_fallthru
        _
    $region6: #{tpu_custom_call.1} parent=1 // loop_footer
      %s16 = sadd.s32 1, %s12
    $region7: #{tpu_custom_call.1} parent=1 // loop_footer_branch
      %11 = sbr.rel target = $region3
    $region8: #{tpu_custom_call.1} parent=1 // loop_exit
      _
    %1886 = vsyncpa [#allocation4], 1
    %s1887 = scalar_lea.sflag [#allocation4], 1
    %1888 = vsyncpa %s1887, 1

</llo_original>
